<compile_context>
chip_gen: v6e
topology: v6e:2x2x1
jax: 0.10.0
libtpu: 0.0.40
codegen_flags: <defaults>
</compile_context>

<pallas_src>
import jax
import jax.numpy as jnp
from jax.experimental import pallas as pl
from jax.experimental.pallas import tpu as pltpu


_VPU_CONTRACTION_MAX = 64     # unrolled VPU broadcast-FMAs when a layer's K <= this
_SINGLE_TILE_MAX_B = 4096     # one grid step (overhead-bound regime) up to this batch
_LARGE_TILE_B = 1024          # tile width once the batch is large enough to split


def _make_mlp_kernel(layer_dims):
    """layer_dims: tuple of (in_dim, out_dim) per Linear layer."""
    n_layers = len(layer_dims)

    def kernel(x_ref, p_ref, out_ref):
        # x_ref:   (in0, tile_b)       activations, batch on the LANE axis
        # p_ref:   (max_dout, n_cols)  packed [w columns | bias] for every layer
        # out_ref: (1, tile_b)         lane-dense sigmoid output
        h = x_ref[...]
        col = 0
        for li, (din, dout) in enumerate(layer_dims):
            bias = p_ref[0:dout, col + din:col + din + 1]            # (dout, 1)
            if din <= _VPU_CONTRACTION_MAX:
                # Pure-VPU path: unrolled broadcast-FMAs over the tiny K.
                acc = p_ref[0:dout, col:col + 1] * h[0:1, :] + bias  # (dout, tile_b)
                for k in range(1, din):
                    acc = acc + p_ref[0:dout, col + k:col + k + 1] * h[k:k + 1, :]
            else:
                # MXU fallback for genuinely wide layers (still lane-dense).
                w = p_ref[0:dout, col:col + din]                     # (dout, din)
                acc = jnp.dot(w, h, preferred_element_type=jnp.float32) + bias
            col += din + 1
            if li < n_layers - 1:
                h = jnp.maximum(acc, 0.0)                            # ReLU (VPU)
            else:
                # Exact, numerically stable sigmoid (exp arg is always <= 0).
                e = jnp.exp(-jnp.abs(acc))                           # EUP
                h = jnp.where(acc >= 0.0, 1.0 / (1.0 + e), e / (1.0 + e))
        out_ref[...] = h.astype(out_ref.dtype)

    return kernel


def pack_params(weights, biases):
    """Pack every Linear's weight columns + bias into one (max_dout, n_cols) slab.

    Column layout per layer: [w[:,0], ..., w[:,din-1], b].  Rows past a layer's
    out_dim are zero-padded and never read (the kernel slices [0:dout, ...]).
    Do this ONCE per parameter set; it is a few KB total -> a single input DMA.
    """
    max_dout = max(int(w.shape[0]) for w in weights)
    blocks = []
    for w, b in zip(weights, biases):
        blk = jnp.concatenate([w, b.reshape(-1, 1)], axis=1)         # (dout, din+1)
        blk = jnp.pad(blk, ((0, max_dout - blk.shape[0]), (0, 0)))
        blocks.append(blk)
    return jnp.concatenate(blocks, axis=1).astype(jnp.float32)       # (max_dout, n_cols)


def interpretable_nn_forward(x, packed_params, layer_dims):
    """Fused Pallas forward pass of InterpretableNN.

    x:             (B, 2) float32
    packed_params: output of pack_params(weights, biases)
    layer_dims:    tuple of (in_dim, out_dim) per Linear layer
    returns:       (B, 1) float32 sigmoid output (== module.forward(x))
    """
    B, in_dim = x.shape
    assert layer_dims[0][0] == in_dim
    out_dim = layer_dims[-1][1]
    assert out_dim == 1

    if B <= _SINGLE_TILE_MAX_B:
        # Overhead-bound regime: one grid step, blocks == full array dims
        # (so no (8,128) divisibility requirement and no padding at all).
        tile_b, n_tiles = B, 1
    else:
        # Large batch: lane-aligned tiles; the ragged last block is safe because
        # every output column depends only on its own batch lane and OOB lanes
        # are never written back.
        tile_b = _LARGE_TILE_B
        n_tiles = pl.cdiv(B, tile_b)

    # Batch on lanes: one transpose, no pad (the old pad/transpose pair is gone).
    x_t = x.T                                                        # (in_dim, B)

    grid_spec = pltpu.PrefetchScalarGridSpec(
        num_scalar_prefetch=0,
        grid=(n_tiles,),
        in_specs=[
            pl.BlockSpec((in_dim, tile_b), lambda i: (0, i)),
            # Single grid-invariant param slab -> one DMA, never re-fetched.
            pl.BlockSpec(packed_params.shape, lambda i: (0, 0)),
        ],
        out_specs=pl.BlockSpec((out_dim, tile_b), lambda i: (0, i)),
    )

    out_t = pl.pallas_call(
        _make_mlp_kernel(layer_dims),
        out_shape=jax.ShapeDtypeStruct((out_dim, B), jnp.float32),
        grid_spec=grid_spec,
        compiler_params=pltpu.CompilerParams(
            # "parallel" only pays off when there are >=2 tiles (v7x 2-TC split).
            dimension_semantics=(("arbitrary",) if n_tiles == 1 else ("parallel",)),
        ),
    )(x_t, packed_params)

    # (1, B) -> (B, 1): identical memory order, so a reshape (no transpose op).
    return out_t.reshape(B, 1)


def init_params(layer_sizes, key):
    """Deterministic PyTorch-style (uniform +-1/sqrt(fan_in)) init.

    Weights are produced in PyTorch nn.Linear layout: (out_features, in_features).
    """
    dims = [2] + list(layer_sizes) + [1]
    weights, biases = [], []
    for i in range(len(dims) - 1):
        fan_in, fan_out = dims[i], dims[i + 1]
        key, kw, kb = jax.random.split(key, 3)
        bound = 1.0 / jnp.sqrt(jnp.float32(fan_in))
        w = jax.random.uniform(kw, (fan_out, fan_in), jnp.float32, -bound, bound)
        b = jax.random.uniform(kb, (fan_out,), jnp.float32, -bound, bound)
        weights.append(w)
        biases.append(b)
    return weights, biases


def reference_forward(x, weights, biases):
    """Pure-JAX reference matching the PyTorch module semantics."""
    h = x
    n = len(weights)
    for i, (w, b) in enumerate(zip(weights, biases)):
        h = h @ w.T + b          # nn.Linear: x @ W.T + b
        if i < n - 1:
            h = jnp.maximum(h, 0.0)
        else:
            h = jax.nn.sigmoid(h)
    return h


if __name__ == "__main__":
    layer_sizes = [32, 16]       # hidden layer widths (InterpretableNN arg)
    batch = 200                  # small, deliberately NOT a multiple of 128

    key = jax.random.PRNGKey(0)
    key, kx = jax.random.split(key)
    x = jax.random.normal(kx, (batch, 2), jnp.float32)

    weights, biases = init_params(layer_sizes, key)
    layer_dims = tuple((w.shape[1], w.shape[0]) for w in weights)
    packed = pack_params(weights, biases)        # pack once, reuse per forward call

    out = interpretable_nn_forward(x, packed, layer_dims)
    out = jax.block_until_ready(out)

    ref = reference_forward(x, weights, biases)
    assert out.shape == (batch, 1)
    max_err = jnp.max(jnp.abs(out - ref))
    assert jnp.allclose(out, ref, atol=1e-5, rtol=1e-5), (
        f"mismatch: max abs err {max_err}")

    print("KERNEL_OK")
</pallas_src>

<mosaic_0001>
module attributes {stable_mosaic.version = 11 : i64} {
  func.func @kernel(%arg0: i32, %arg1: memref<2x200xf32, #tpu.memory_space<vmem>>, %arg2: memref<32x53xf32, #tpu.memory_space<vmem>>, %arg3: memref<1x200xf32, #tpu.memory_space<vmem>>) attributes {dimension_semantics = [#tpu.dimension_semantics<arbitrary>], iteration_bounds = array<i64: 1>, scalar_prefetch = 0 : i64, scratch_operands = 0 : i64, tpu.core_type = #tpu.core_type<tc>, window_params = [{transform_indices = @transform_0, window_bounds = array<i64: 2, 200>}, {pipeline_mode = #tpu.pipeline_mode<synchronous>, transform_indices = @transform_1, window_bounds = array<i64: 32, 53>}, {transform_indices = @transform_2, window_bounds = array<i64: 1, 200>}]} {
    %c0 = arith.constant 0 : index
    %c0_0 = arith.constant 0 : index
    %0 = vector.load %arg1[%c0, %c0_0] : memref<2x200xf32, #tpu.memory_space<vmem>>, vector<2x200xf32>
    %c0_1 = arith.constant 0 : index
    %c2 = arith.constant 2 : index
    %1 = vector.load %arg2[%c0_1, %c2] : memref<32x53xf32, #tpu.memory_space<vmem>>, vector<32x1xf32>
    %c0_2 = arith.constant 0 : index
    %c0_3 = arith.constant 0 : index
    %2 = vector.load %arg2[%c0_2, %c0_3] : memref<32x53xf32, #tpu.memory_space<vmem>>, vector<32x1xf32>
    %3 = vector.extract_strided_slice %0 {offsets = [0, 0], sizes = [1, 200], strides = [1, 1]} : vector<2x200xf32> to vector<1x200xf32>
    %4 = vector.broadcast %2 : vector<32x1xf32> to vector<32x200xf32>
    %5 = vector.broadcast %3 : vector<1x200xf32> to vector<32x200xf32>
    %6 = arith.mulf %4, %5 : vector<32x200xf32>
    %7 = vector.broadcast %1 : vector<32x1xf32> to vector<32x200xf32>
    %8 = arith.addf %6, %7 : vector<32x200xf32>
    %c0_4 = arith.constant 0 : index
    %c1 = arith.constant 1 : index
    %9 = vector.load %arg2[%c0_4, %c1] : memref<32x53xf32, #tpu.memory_space<vmem>>, vector<32x1xf32>
    %10 = vector.extract_strided_slice %0 {offsets = [1, 0], sizes = [1, 200], strides = [1, 1]} : vector<2x200xf32> to vector<1x200xf32>
    %11 = vector.broadcast %9 : vector<32x1xf32> to vector<32x200xf32>
    %12 = vector.broadcast %10 : vector<1x200xf32> to vector<32x200xf32>
    %13 = arith.mulf %11, %12 : vector<32x200xf32>
    %14 = arith.addf %8, %13 : vector<32x200xf32>
    %cst = arith.constant 0.000000e+00 : f32
    %15 = vector.broadcast %cst : f32 to vector<32x200xf32>
    %16 = arith.maximumf %14, %15 : vector<32x200xf32>
    %c0_5 = arith.constant 0 : index
    %c35 = arith.constant 35 : index
    %17 = vector.load %arg2[%c0_5, %c35] : memref<32x53xf32, #tpu.memory_space<vmem>>, vector<16x1xf32>
    %c0_6 = arith.constant 0 : index
    %c3 = arith.constant 3 : index
    %18 = vector.load %arg2[%c0_6, %c3] : memref<32x53xf32, #tpu.memory_space<vmem>>, vector<16x1xf32>
    %19 = vector.extract_strided_slice %16 {offsets = [0, 0], sizes = [1, 200], strides = [1, 1]} : vector<32x200xf32> to vector<1x200xf32>
    %20 = vector.broadcast %18 : vector<16x1xf32> to vector<16x200xf32>
    %21 = vector.broadcast %19 : vector<1x200xf32> to vector<16x200xf32>
    %22 = arith.mulf %20, %21 : vector<16x200xf32>
    %23 = vector.broadcast %17 : vector<16x1xf32> to vector<16x200xf32>
    %24 = arith.addf %22, %23 : vector<16x200xf32>
    %c0_7 = arith.constant 0 : index
    %c4 = arith.constant 4 : index
    %25 = vector.load %arg2[%c0_7, %c4] : memref<32x53xf32, #tpu.memory_space<vmem>>, vector<16x1xf32>
    %26 = vector.extract_strided_slice %16 {offsets = [1, 0], sizes = [1, 200], strides = [1, 1]} : vector<32x200xf32> to vector<1x200xf32>
    %27 = vector.broadcast %25 : vector<16x1xf32> to vector<16x200xf32>
    %28 = vector.broadcast %26 : vector<1x200xf32> to vector<16x200xf32>
    %29 = arith.mulf %27, %28 : vector<16x200xf32>
    %30 = arith.addf %24, %29 : vector<16x200xf32>
    %c0_8 = arith.constant 0 : index
    %c5 = arith.constant 5 : index
    %31 = vector.load %arg2[%c0_8, %c5] : memref<32x53xf32, #tpu.memory_space<vmem>>, vector<16x1xf32>
    %32 = vector.extract_strided_slice %16 {offsets = [2, 0], sizes = [1, 200], strides = [1, 1]} : vector<32x200xf32> to vector<1x200xf32>
    %33 = vector.broadcast %31 : vector<16x1xf32> to vector<16x200xf32>
    %34 = vector.broadcast %32 : vector<1x200xf32> to vector<16x200xf32>
    %35 = arith.mulf %33, %34 : vector<16x200xf32>
    %36 = arith.addf %30, %35 : vector<16x200xf32>
    %c0_9 = arith.constant 0 : index
    %c6 = arith.constant 6 : index
    %37 = vector.load %arg2[%c0_9, %c6] : memref<32x53xf32, #tpu.memory_space<vmem>>, vector<16x1xf32>
    %38 = vector.extract_strided_slice %16 {offsets = [3, 0], sizes = [1, 200], strides = [1, 1]} : vector<32x200xf32> to vector<1x200xf32>
    %39 = vector.broadcast %37 : vector<16x1xf32> to vector<16x200xf32>
    %40 = vector.broadcast %38 : vector<1x200xf32> to vector<16x200xf32>
    %41 = arith.mulf %39, %40 : vector<16x200xf32>
    %42 = arith.addf %36, %41 : vector<16x200xf32>
    %c0_10 = arith.constant 0 : index
    %c7 = arith.constant 7 : index
    %43 = vector.load %arg2[%c0_10, %c7] : memref<32x53xf32, #tpu.memory_space<vmem>>, vector<16x1xf32>
    %44 = vector.extract_strided_slice %16 {offsets = [4, 0], sizes = [1, 200], strides = [1, 1]} : vector<32x200xf32> to vector<1x200xf32>
    %45 = vector.broadcast %43 : vector<16x1xf32> to vector<16x200xf32>
    %46 = vector.broadcast %44 : vector<1x200xf32> to vector<16x200xf32>
    %47 = arith.mulf %45, %46 : vector<16x200xf32>
    %48 = arith.addf %42, %47 : vector<16x200xf32>
    %c0_11 = arith.constant 0 : index
    %c8 = arith.constant 8 : index
    %49 = vector.load %arg2[%c0_11, %c8] : memref<32x53xf32, #tpu.memory_space<vmem>>, vector<16x1xf32>
    %50 = vector.extract_strided_slice %16 {offsets = [5, 0], sizes = [1, 200], strides = [1, 1]} : vector<32x200xf32> to vector<1x200xf32>
    %51 = vector.broadcast %49 : vector<16x1xf32> to vector<16x200xf32>
    %52 = vector.broadcast %50 : vector<1x200xf32> to vector<16x200xf32>
    %53 = arith.mulf %51, %52 : vector<16x200xf32>
    %54 = arith.addf %48, %53 : vector<16x200xf32>
    %c0_12 = arith.constant 0 : index
    %c9 = arith.constant 9 : index
    %55 = vector.load %arg2[%c0_12, %c9] : memref<32x53xf32, #tpu.memory_space<vmem>>, vector<16x1xf32>
    %56 = vector.extract_strided_slice %16 {offsets = [6, 0], sizes = [1, 200], strides = [1, 1]} : vector<32x200xf32> to vector<1x200xf32>
    %57 = vector.broadcast %55 : vector<16x1xf32> to vector<16x200xf32>
    %58 = vector.broadcast %56 : vector<1x200xf32> to vector<16x200xf32>
    %59 = arith.mulf %57, %58 : vector<16x200xf32>
    %60 = arith.addf %54, %59 : vector<16x200xf32>
    %c0_13 = arith.constant 0 : index
    %c10 = arith.constant 10 : index
    %61 = vector.load %arg2[%c0_13, %c10] : memref<32x53xf32, #tpu.memory_space<vmem>>, vector<16x1xf32>
    %62 = vector.extract_strided_slice %16 {offsets = [7, 0], sizes = [1, 200], strides = [1, 1]} : vector<32x200xf32> to vector<1x200xf32>
    %63 = vector.broadcast %61 : vector<16x1xf32> to vector<16x200xf32>
    %64 = vector.broadcast %62 : vector<1x200xf32> to vector<16x200xf32>
    %65 = arith.mulf %63, %64 : vector<16x200xf32>
    %66 = arith.addf %60, %65 : vector<16x200xf32>
    %c0_14 = arith.constant 0 : index
    %c11 = arith.constant 11 : index
    %67 = vector.load %arg2[%c0_14, %c11] : memref<32x53xf32, #tpu.memory_space<vmem>>, vector<16x1xf32>
    %68 = vector.extract_strided_slice %16 {offsets = [8, 0], sizes = [1, 200], strides = [1, 1]} : vector<32x200xf32> to vector<1x200xf32>
    %69 = vector.broadcast %67 : vector<16x1xf32> to vector<16x200xf32>
    %70 = vector.broadcast %68 : vector<1x200xf32> to vector<16x200xf32>
    %71 = arith.mulf %69, %70 : vector<16x200xf32>
    %72 = arith.addf %66, %71 : vector<16x200xf32>
    %c0_15 = arith.constant 0 : index
    %c12 = arith.constant 12 : index
    %73 = vector.load %arg2[%c0_15, %c12] : memref<32x53xf32, #tpu.memory_space<vmem>>, vector<16x1xf32>
    %74 = vector.extract_strided_slice %16 {offsets = [9, 0], sizes = [1, 200], strides = [1, 1]} : vector<32x200xf32> to vector<1x200xf32>
    %75 = vector.broadcast %73 : vector<16x1xf32> to vector<16x200xf32>
    %76 = vector.broadcast %74 : vector<1x200xf32> to vector<16x200xf32>
    %77 = arith.mulf %75, %76 : vector<16x200xf32>
    %78 = arith.addf %72, %77 : vector<16x200xf32>
    %c0_16 = arith.constant 0 : index
    %c13 = arith.constant 13 : index
    %79 = vector.load %arg2[%c0_16, %c13] : memref<32x53xf32, #tpu.memory_space<vmem>>, vector<16x1xf32>
    %80 = vector.extract_strided_slice %16 {offsets = [10, 0], sizes = [1, 200], strides = [1, 1]} : vector<32x200xf32> to vector<1x200xf32>
    %81 = vector.broadcast %79 : vector<16x1xf32> to vector<16x200xf32>
    %82 = vector.broadcast %80 : vector<1x200xf32> to vector<16x200xf32>
    %83 = arith.mulf %81, %82 : vector<16x200xf32>
    %84 = arith.addf %78, %83 : vector<16x200xf32>
    %c0_17 = arith.constant 0 : index
    %c14 = arith.constant 14 : index
    %85 = vector.load %arg2[%c0_17, %c14] : memref<32x53xf32, #tpu.memory_space<vmem>>, vector<16x1xf32>
    %86 = vector.extract_strided_slice %16 {offsets = [11, 0], sizes = [1, 200], strides = [1, 1]} : vector<32x200xf32> to vector<1x200xf32>
    %87 = vector.broadcast %85 : vector<16x1xf32> to vector<16x200xf32>
    %88 = vector.broadcast %86 : vector<1x200xf32> to vector<16x200xf32>
    %89 = arith.mulf %87, %88 : vector<16x200xf32>
    %90 = arith.addf %84, %89 : vector<16x200xf32>
    %c0_18 = arith.constant 0 : index
    %c15 = arith.constant 15 : index
    %91 = vector.load %arg2[%c0_18, %c15] : memref<32x53xf32, #tpu.memory_space<vmem>>, vector<16x1xf32>
    %92 = vector.extract_strided_slice %16 {offsets = [12, 0], sizes = [1, 200], strides = [1, 1]} : vector<32x200xf32> to vector<1x200xf32>
    %93 = vector.broadcast %91 : vector<16x1xf32> to vector<16x200xf32>
    %94 = vector.broadcast %92 : vector<1x200xf32> to vector<16x200xf32>
    %95 = arith.mulf %93, %94 : vector<16x200xf32>
    %96 = arith.addf %90, %95 : vector<16x200xf32>
    %c0_19 = arith.constant 0 : index
    %c16 = arith.constant 16 : index
    %97 = vector.load %arg2[%c0_19, %c16] : memref<32x53xf32, #tpu.memory_space<vmem>>, vector<16x1xf32>
    %98 = vector.extract_strided_slice %16 {offsets = [13, 0], sizes = [1, 200], strides = [1, 1]} : vector<32x200xf32> to vector<1x200xf32>
    %99 = vector.broadcast %97 : vector<16x1xf32> to vector<16x200xf32>
    %100 = vector.broadcast %98 : vector<1x200xf32> to vector<16x200xf32>
    %101 = arith.mulf %99, %100 : vector<16x200xf32>
    %102 = arith.addf %96, %101 : vector<16x200xf32>
    %c0_20 = arith.constant 0 : index
    %c17 = arith.constant 17 : index
    %103 = vector.load %arg2[%c0_20, %c17] : memref<32x53xf32, #tpu.memory_space<vmem>>, vector<16x1xf32>
    %104 = vector.extract_strided_slice %16 {offsets = [14, 0], sizes = [1, 200], strides = [1, 1]} : vector<32x200xf32> to vector<1x200xf32>
    %105 = vector.broadcast %103 : vector<16x1xf32> to vector<16x200xf32>
    %106 = vector.broadcast %104 : vector<1x200xf32> to vector<16x200xf32>
    %107 = arith.mulf %105, %106 : vector<16x200xf32>
    %108 = arith.addf %102, %107 : vector<16x200xf32>
    %c0_21 = arith.constant 0 : index
    %c18 = arith.constant 18 : index
    %109 = vector.load %arg2[%c0_21, %c18] : memref<32x53xf32, #tpu.memory_space<vmem>>, vector<16x1xf32>
    %110 = vector.extract_strided_slice %16 {offsets = [15, 0], sizes = [1, 200], strides = [1, 1]} : vector<32x200xf32> to vector<1x200xf32>
    %111 = vector.broadcast %109 : vector<16x1xf32> to vector<16x200xf32>
    %112 = vector.broadcast %110 : vector<1x200xf32> to vector<16x200xf32>
    %113 = arith.mulf %111, %112 : vector<16x200xf32>
    %114 = arith.addf %108, %113 : vector<16x200xf32>
    %c0_22 = arith.constant 0 : index
    %c19 = arith.constant 19 : index
    %115 = vector.load %arg2[%c0_22, %c19] : memref<32x53xf32, #tpu.memory_space<vmem>>, vector<16x1xf32>
    %116 = vector.extract_strided_slice %16 {offsets = [16, 0], sizes = [1, 200], strides = [1, 1]} : vector<32x200xf32> to vector<1x200xf32>
    %117 = vector.broadcast %115 : vector<16x1xf32> to vector<16x200xf32>
    %118 = vector.broadcast %116 : vector<1x200xf32> to vector<16x200xf32>
    %119 = arith.mulf %117, %118 : vector<16x200xf32>
    %120 = arith.addf %114, %119 : vector<16x200xf32>
    %c0_23 = arith.constant 0 : index
    %c20 = arith.constant 20 : index
    %121 = vector.load %arg2[%c0_23, %c20] : memref<32x53xf32, #tpu.memory_space<vmem>>, vector<16x1xf32>
    %122 = vector.extract_strided_slice %16 {offsets = [17, 0], sizes = [1, 200], strides = [1, 1]} : vector<32x200xf32> to vector<1x200xf32>
    %123 = vector.broadcast %121 : vector<16x1xf32> to vector<16x200xf32>
    %124 = vector.broadcast %122 : vector<1x200xf32> to vector<16x200xf32>
    %125 = arith.mulf %123, %124 : vector<16x200xf32>
    %126 = arith.addf %120, %125 : vector<16x200xf32>
    %c0_24 = arith.constant 0 : index
    %c21 = arith.constant 21 : index
    %127 = vector.load %arg2[%c0_24, %c21] : memref<32x53xf32, #tpu.memory_space<vmem>>, vector<16x1xf32>
    %128 = vector.extract_strided_slice %16 {offsets = [18, 0], sizes = [1, 200], strides = [1, 1]} : vector<32x200xf32> to vector<1x200xf32>
    %129 = vector.broadcast %127 : vector<16x1xf32> to vector<16x200xf32>
    %130 = vector.broadcast %128 : vector<1x200xf32> to vector<16x200xf32>
    %131 = arith.mulf %129, %130 : vector<16x200xf32>
    %132 = arith.addf %126, %131 : vector<16x200xf32>
    %c0_25 = arith.constant 0 : index
    %c22 = arith.constant 22 : index
    %133 = vector.load %arg2[%c0_25, %c22] : memref<32x53xf32, #tpu.memory_space<vmem>>, vector<16x1xf32>
    %134 = vector.extract_strided_slice %16 {offsets = [19, 0], sizes = [1, 200], strides = [1, 1]} : vector<32x200xf32> to vector<1x200xf32>
    %135 = vector.broadcast %133 : vector<16x1xf32> to vector<16x200xf32>
    %136 = vector.broadcast %134 : vector<1x200xf32> to vector<16x200xf32>
    %137 = arith.mulf %135, %136 : vector<16x200xf32>
    %138 = arith.addf %132, %137 : vector<16x200xf32>
    %c0_26 = arith.constant 0 : index
    %c23 = arith.constant 23 : index
    %139 = vector.load %arg2[%c0_26, %c23] : memref<32x53xf32, #tpu.memory_space<vmem>>, vector<16x1xf32>
    %140 = vector.extract_strided_slice %16 {offsets = [20, 0], sizes = [1, 200], strides = [1, 1]} : vector<32x200xf32> to vector<1x200xf32>
    %141 = vector.broadcast %139 : vector<16x1xf32> to vector<16x200xf32>
    %142 = vector.broadcast %140 : vector<1x200xf32> to vector<16x200xf32>
    %143 = arith.mulf %141, %142 : vector<16x200xf32>
    %144 = arith.addf %138, %143 : vector<16x200xf32>
    %c0_27 = arith.constant 0 : index
    %c24 = arith.constant 24 : index
    %145 = vector.load %arg2[%c0_27, %c24] : memref<32x53xf32, #tpu.memory_space<vmem>>, vector<16x1xf32>
    %146 = vector.extract_strided_slice %16 {offsets = [21, 0], sizes = [1, 200], strides = [1, 1]} : vector<32x200xf32> to vector<1x200xf32>
    %147 = vector.broadcast %145 : vector<16x1xf32> to vector<16x200xf32>
    %148 = vector.broadcast %146 : vector<1x200xf32> to vector<16x200xf32>
    %149 = arith.mulf %147, %148 : vector<16x200xf32>
    %150 = arith.addf %144, %149 : vector<16x200xf32>
    %c0_28 = arith.constant 0 : index
    %c25 = arith.constant 25 : index
    %151 = vector.load %arg2[%c0_28, %c25] : memref<32x53xf32, #tpu.memory_space<vmem>>, vector<16x1xf32>
    %152 = vector.extract_strided_slice %16 {offsets = [22, 0], sizes = [1, 200], strides = [1, 1]} : vector<32x200xf32> to vector<1x200xf32>
    %153 = vector.broadcast %151 : vector<16x1xf32> to vector<16x200xf32>
    %154 = vector.broadcast %152 : vector<1x200xf32> to vector<16x200xf32>
    %155 = arith.mulf %153, %154 : vector<16x200xf32>
    %156 = arith.addf %150, %155 : vector<16x200xf32>
    %c0_29 = arith.constant 0 : index
    %c26 = arith.constant 26 : index
    %157 = vector.load %arg2[%c0_29, %c26] : memref<32x53xf32, #tpu.memory_space<vmem>>, vector<16x1xf32>
    %158 = vector.extract_strided_slice %16 {offsets = [23, 0], sizes = [1, 200], strides = [1, 1]} : vector<32x200xf32> to vector<1x200xf32>
    %159 = vector.broadcast %157 : vector<16x1xf32> to vector<16x200xf32>
    %160 = vector.broadcast %158 : vector<1x200xf32> to vector<16x200xf32>
    %161 = arith.mulf %159, %160 : vector<16x200xf32>
    %162 = arith.addf %156, %161 : vector<16x200xf32>
    %c0_30 = arith.constant 0 : index
    %c27 = arith.constant 27 : index
    %163 = vector.load %arg2[%c0_30, %c27] : memref<32x53xf32, #tpu.memory_space<vmem>>, vector<16x1xf32>
    %164 = vector.extract_strided_slice %16 {offsets = [24, 0], sizes = [1, 200], strides = [1, 1]} : vector<32x200xf32> to vector<1x200xf32>
    %165 = vector.broadcast %163 : vector<16x1xf32> to vector<16x200xf32>
    %166 = vector.broadcast %164 : vector<1x200xf32> to vector<16x200xf32>
    %167 = arith.mulf %165, %166 : vector<16x200xf32>
    %168 = arith.addf %162, %167 : vector<16x200xf32>
    %c0_31 = arith.constant 0 : index
    %c28 = arith.constant 28 : index
    %169 = vector.load %arg2[%c0_31, %c28] : memref<32x53xf32, #tpu.memory_space<vmem>>, vector<16x1xf32>
    %170 = vector.extract_strided_slice %16 {offsets = [25, 0], sizes = [1, 200], strides = [1, 1]} : vector<32x200xf32> to vector<1x200xf32>
    %171 = vector.broadcast %169 : vector<16x1xf32> to vector<16x200xf32>
    %172 = vector.broadcast %170 : vector<1x200xf32> to vector<16x200xf32>
    %173 = arith.mulf %171, %172 : vector<16x200xf32>
    %174 = arith.addf %168, %173 : vector<16x200xf32>
    %c0_32 = arith.constant 0 : index
    %c29 = arith.constant 29 : index
    %175 = vector.load %arg2[%c0_32, %c29] : memref<32x53xf32, #tpu.memory_space<vmem>>, vector<16x1xf32>
    %176 = vector.extract_strided_slice %16 {offsets = [26, 0], sizes = [1, 200], strides = [1, 1]} : vector<32x200xf32> to vector<1x200xf32>
    %177 = vector.broadcast %175 : vector<16x1xf32> to vector<16x200xf32>
    %178 = vector.broadcast %176 : vector<1x200xf32> to vector<16x200xf32>
    %179 = arith.mulf %177, %178 : vector<16x200xf32>
    %180 = arith.addf %174, %179 : vector<16x200xf32>
    %c0_33 = arith.constant 0 : index
    %c30 = arith.constant 30 : index
    %181 = vector.load %arg2[%c0_33, %c30] : memref<32x53xf32, #tpu.memory_space<vmem>>, vector<16x1xf32>
    %182 = vector.extract_strided_slice %16 {offsets = [27, 0], sizes = [1, 200], strides = [1, 1]} : vector<32x200xf32> to vector<1x200xf32>
    %183 = vector.broadcast %181 : vector<16x1xf32> to vector<16x200xf32>
    %184 = vector.broadcast %182 : vector<1x200xf32> to vector<16x200xf32>
    %185 = arith.mulf %183, %184 : vector<16x200xf32>
    %186 = arith.addf %180, %185 : vector<16x200xf32>
    %c0_34 = arith.constant 0 : index
    %c31 = arith.constant 31 : index
    %187 = vector.load %arg2[%c0_34, %c31] : memref<32x53xf32, #tpu.memory_space<vmem>>, vector<16x1xf32>
    %188 = vector.extract_strided_slice %16 {offsets = [28, 0], sizes = [1, 200], strides = [1, 1]} : vector<32x200xf32> to vector<1x200xf32>
    %189 = vector.broadcast %187 : vector<16x1xf32> to vector<16x200xf32>
    %190 = vector.broadcast %188 : vector<1x200xf32> to vector<16x200xf32>
    %191 = arith.mulf %189, %190 : vector<16x200xf32>
    %192 = arith.addf %186, %191 : vector<16x200xf32>
    %c0_35 = arith.constant 0 : index
    %c32 = arith.constant 32 : index
    %193 = vector.load %arg2[%c0_35, %c32] : memref<32x53xf32, #tpu.memory_space<vmem>>, vector<16x1xf32>
    %194 = vector.extract_strided_slice %16 {offsets = [29, 0], sizes = [1, 200], strides = [1, 1]} : vector<32x200xf32> to vector<1x200xf32>
    %195 = vector.broadcast %193 : vector<16x1xf32> to vector<16x200xf32>
    %196 = vector.broadcast %194 : vector<1x200xf32> to vector<16x200xf32>
    %197 = arith.mulf %195, %196 : vector<16x200xf32>
    %198 = arith.addf %192, %197 : vector<16x200xf32>
    %c0_36 = arith.constant 0 : index
    %c33 = arith.constant 33 : index
    %199 = vector.load %arg2[%c0_36, %c33] : memref<32x53xf32, #tpu.memory_space<vmem>>, vector<16x1xf32>
    %200 = vector.extract_strided_slice %16 {offsets = [30, 0], sizes = [1, 200], strides = [1, 1]} : vector<32x200xf32> to vector<1x200xf32>
    %201 = vector.broadcast %199 : vector<16x1xf32> to vector<16x200xf32>
    %202 = vector.broadcast %200 : vector<1x200xf32> to vector<16x200xf32>
    %203 = arith.mulf %201, %202 : vector<16x200xf32>
    %204 = arith.addf %198, %203 : vector<16x200xf32>
    %c0_37 = arith.constant 0 : index
    %c34 = arith.constant 34 : index
    %205 = vector.load %arg2[%c0_37, %c34] : memref<32x53xf32, #tpu.memory_space<vmem>>, vector<16x1xf32>
    %206 = vector.extract_strided_slice %16 {offsets = [31, 0], sizes = [1, 200], strides = [1, 1]} : vector<32x200xf32> to vector<1x200xf32>
    %207 = vector.broadcast %205 : vector<16x1xf32> to vector<16x200xf32>
    %208 = vector.broadcast %206 : vector<1x200xf32> to vector<16x200xf32>
    %209 = arith.mulf %207, %208 : vector<16x200xf32>
    %210 = arith.addf %204, %209 : vector<16x200xf32>
    %cst_38 = arith.constant 0.000000e+00 : f32
    %211 = vector.broadcast %cst_38 : f32 to vector<16x200xf32>
    %212 = arith.maximumf %210, %211 : vector<16x200xf32>
    %c0_39 = arith.constant 0 : index
    %c52 = arith.constant 52 : index
    %213 = vector.load %arg2[%c0_39, %c52] : memref<32x53xf32, #tpu.memory_space<vmem>>, vector<1x1xf32>
    %c0_40 = arith.constant 0 : index
    %c36 = arith.constant 36 : index
    %214 = vector.load %arg2[%c0_40, %c36] : memref<32x53xf32, #tpu.memory_space<vmem>>, vector<1x1xf32>
    %215 = vector.extract_strided_slice %212 {offsets = [0, 0], sizes = [1, 200], strides = [1, 1]} : vector<16x200xf32> to vector<1x200xf32>
    %216 = vector.broadcast %214 : vector<1x1xf32> to vector<1x200xf32>
    %217 = arith.mulf %216, %215 : vector<1x200xf32>
    %218 = vector.broadcast %213 : vector<1x1xf32> to vector<1x200xf32>
    %219 = arith.addf %217, %218 : vector<1x200xf32>
    %c0_41 = arith.constant 0 : index
    %c37 = arith.constant 37 : index
    %220 = vector.load %arg2[%c0_41, %c37] : memref<32x53xf32, #tpu.memory_space<vmem>>, vector<1x1xf32>
    %221 = vector.extract_strided_slice %212 {offsets = [1, 0], sizes = [1, 200], strides = [1, 1]} : vector<16x200xf32> to vector<1x200xf32>
    %222 = vector.broadcast %220 : vector<1x1xf32> to vector<1x200xf32>
    %223 = arith.mulf %222, %221 : vector<1x200xf32>
    %224 = arith.addf %219, %223 : vector<1x200xf32>
    %c0_42 = arith.constant 0 : index
    %c38 = arith.constant 38 : index
    %225 = vector.load %arg2[%c0_42, %c38] : memref<32x53xf32, #tpu.memory_space<vmem>>, vector<1x1xf32>
    %226 = vector.extract_strided_slice %212 {offsets = [2, 0], sizes = [1, 200], strides = [1, 1]} : vector<16x200xf32> to vector<1x200xf32>
    %227 = vector.broadcast %225 : vector<1x1xf32> to vector<1x200xf32>
    %228 = arith.mulf %227, %226 : vector<1x200xf32>
    %229 = arith.addf %224, %228 : vector<1x200xf32>
    %c0_43 = arith.constant 0 : index
    %c39 = arith.constant 39 : index
    %230 = vector.load %arg2[%c0_43, %c39] : memref<32x53xf32, #tpu.memory_space<vmem>>, vector<1x1xf32>
    %231 = vector.extract_strided_slice %212 {offsets = [3, 0], sizes = [1, 200], strides = [1, 1]} : vector<16x200xf32> to vector<1x200xf32>
    %232 = vector.broadcast %230 : vector<1x1xf32> to vector<1x200xf32>
    %233 = arith.mulf %232, %231 : vector<1x200xf32>
    %234 = arith.addf %229, %233 : vector<1x200xf32>
    %c0_44 = arith.constant 0 : index
    %c40 = arith.constant 40 : index
    %235 = vector.load %arg2[%c0_44, %c40] : memref<32x53xf32, #tpu.memory_space<vmem>>, vector<1x1xf32>
    %236 = vector.extract_strided_slice %212 {offsets = [4, 0], sizes = [1, 200], strides = [1, 1]} : vector<16x200xf32> to vector<1x200xf32>
    %237 = vector.broadcast %235 : vector<1x1xf32> to vector<1x200xf32>
    %238 = arith.mulf %237, %236 : vector<1x200xf32>
    %239 = arith.addf %234, %238 : vector<1x200xf32>
    %c0_45 = arith.constant 0 : index
    %c41 = arith.constant 41 : index
    %240 = vector.load %arg2[%c0_45, %c41] : memref<32x53xf32, #tpu.memory_space<vmem>>, vector<1x1xf32>
    %241 = vector.extract_strided_slice %212 {offsets = [5, 0], sizes = [1, 200], strides = [1, 1]} : vector<16x200xf32> to vector<1x200xf32>
    %242 = vector.broadcast %240 : vector<1x1xf32> to vector<1x200xf32>
    %243 = arith.mulf %242, %241 : vector<1x200xf32>
    %244 = arith.addf %239, %243 : vector<1x200xf32>
    %c0_46 = arith.constant 0 : index
    %c42 = arith.constant 42 : index
    %245 = vector.load %arg2[%c0_46, %c42] : memref<32x53xf32, #tpu.memory_space<vmem>>, vector<1x1xf32>
    %246 = vector.extract_strided_slice %212 {offsets = [6, 0], sizes = [1, 200], strides = [1, 1]} : vector<16x200xf32> to vector<1x200xf32>
    %247 = vector.broadcast %245 : vector<1x1xf32> to vector<1x200xf32>
    %248 = arith.mulf %247, %246 : vector<1x200xf32>
    %249 = arith.addf %244, %248 : vector<1x200xf32>
    %c0_47 = arith.constant 0 : index
    %c43 = arith.constant 43 : index
    %250 = vector.load %arg2[%c0_47, %c43] : memref<32x53xf32, #tpu.memory_space<vmem>>, vector<1x1xf32>
    %251 = vector.extract_strided_slice %212 {offsets = [7, 0], sizes = [1, 200], strides = [1, 1]} : vector<16x200xf32> to vector<1x200xf32>
    %252 = vector.broadcast %250 : vector<1x1xf32> to vector<1x200xf32>
    %253 = arith.mulf %252, %251 : vector<1x200xf32>
    %254 = arith.addf %249, %253 : vector<1x200xf32>
    %c0_48 = arith.constant 0 : index
    %c44 = arith.constant 44 : index
    %255 = vector.load %arg2[%c0_48, %c44] : memref<32x53xf32, #tpu.memory_space<vmem>>, vector<1x1xf32>
    %256 = vector.extract_strided_slice %212 {offsets = [8, 0], sizes = [1, 200], strides = [1, 1]} : vector<16x200xf32> to vector<1x200xf32>
    %257 = vector.broadcast %255 : vector<1x1xf32> to vector<1x200xf32>
    %258 = arith.mulf %257, %256 : vector<1x200xf32>
    %259 = arith.addf %254, %258 : vector<1x200xf32>
    %c0_49 = arith.constant 0 : index
    %c45 = arith.constant 45 : index
    %260 = vector.load %arg2[%c0_49, %c45] : memref<32x53xf32, #tpu.memory_space<vmem>>, vector<1x1xf32>
    %261 = vector.extract_strided_slice %212 {offsets = [9, 0], sizes = [1, 200], strides = [1, 1]} : vector<16x200xf32> to vector<1x200xf32>
    %262 = vector.broadcast %260 : vector<1x1xf32> to vector<1x200xf32>
    %263 = arith.mulf %262, %261 : vector<1x200xf32>
    %264 = arith.addf %259, %263 : vector<1x200xf32>
    %c0_50 = arith.constant 0 : index
    %c46 = arith.constant 46 : index
    %265 = vector.load %arg2[%c0_50, %c46] : memref<32x53xf32, #tpu.memory_space<vmem>>, vector<1x1xf32>
    %266 = vector.extract_strided_slice %212 {offsets = [10, 0], sizes = [1, 200], strides = [1, 1]} : vector<16x200xf32> to vector<1x200xf32>
    %267 = vector.broadcast %265 : vector<1x1xf32> to vector<1x200xf32>
    %268 = arith.mulf %267, %266 : vector<1x200xf32>
    %269 = arith.addf %264, %268 : vector<1x200xf32>
    %c0_51 = arith.constant 0 : index
    %c47 = arith.constant 47 : index
    %270 = vector.load %arg2[%c0_51, %c47] : memref<32x53xf32, #tpu.memory_space<vmem>>, vector<1x1xf32>
    %271 = vector.extract_strided_slice %212 {offsets = [11, 0], sizes = [1, 200], strides = [1, 1]} : vector<16x200xf32> to vector<1x200xf32>
    %272 = vector.broadcast %270 : vector<1x1xf32> to vector<1x200xf32>
    %273 = arith.mulf %272, %271 : vector<1x200xf32>
    %274 = arith.addf %269, %273 : vector<1x200xf32>
    %c0_52 = arith.constant 0 : index
    %c48 = arith.constant 48 : index
    %275 = vector.load %arg2[%c0_52, %c48] : memref<32x53xf32, #tpu.memory_space<vmem>>, vector<1x1xf32>
    %276 = vector.extract_strided_slice %212 {offsets = [12, 0], sizes = [1, 200], strides = [1, 1]} : vector<16x200xf32> to vector<1x200xf32>
    %277 = vector.broadcast %275 : vector<1x1xf32> to vector<1x200xf32>
    %278 = arith.mulf %277, %276 : vector<1x200xf32>
    %279 = arith.addf %274, %278 : vector<1x200xf32>
    %c0_53 = arith.constant 0 : index
    %c49 = arith.constant 49 : index
    %280 = vector.load %arg2[%c0_53, %c49] : memref<32x53xf32, #tpu.memory_space<vmem>>, vector<1x1xf32>
    %281 = vector.extract_strided_slice %212 {offsets = [13, 0], sizes = [1, 200], strides = [1, 1]} : vector<16x200xf32> to vector<1x200xf32>
    %282 = vector.broadcast %280 : vector<1x1xf32> to vector<1x200xf32>
    %283 = arith.mulf %282, %281 : vector<1x200xf32>
    %284 = arith.addf %279, %283 : vector<1x200xf32>
    %c0_54 = arith.constant 0 : index
    %c50 = arith.constant 50 : index
    %285 = vector.load %arg2[%c0_54, %c50] : memref<32x53xf32, #tpu.memory_space<vmem>>, vector<1x1xf32>
    %286 = vector.extract_strided_slice %212 {offsets = [14, 0], sizes = [1, 200], strides = [1, 1]} : vector<16x200xf32> to vector<1x200xf32>
    %287 = vector.broadcast %285 : vector<1x1xf32> to vector<1x200xf32>
    %288 = arith.mulf %287, %286 : vector<1x200xf32>
    %289 = arith.addf %284, %288 : vector<1x200xf32>
    %c0_55 = arith.constant 0 : index
    %c51 = arith.constant 51 : index
    %290 = vector.load %arg2[%c0_55, %c51] : memref<32x53xf32, #tpu.memory_space<vmem>>, vector<1x1xf32>
    %291 = vector.extract_strided_slice %212 {offsets = [15, 0], sizes = [1, 200], strides = [1, 1]} : vector<16x200xf32> to vector<1x200xf32>
    %292 = vector.broadcast %290 : vector<1x1xf32> to vector<1x200xf32>
    %293 = arith.mulf %292, %291 : vector<1x200xf32>
    %294 = arith.addf %289, %293 : vector<1x200xf32>
    %295 = math.absf %294 : vector<1x200xf32>
    %cst_56 = arith.constant 0.000000e+00 : f32
    %296 = vector.broadcast %cst_56 : f32 to vector<1x200xf32>
    %297 = arith.subf %296, %295 : vector<1x200xf32>
    %298 = math.exp %297 : vector<1x200xf32>
    %cst_57 = arith.constant 0.000000e+00 : f32
    %299 = vector.broadcast %cst_57 : f32 to vector<1x200xf32>
    %300 = arith.cmpf oge, %294, %299 : vector<1x200xf32>
    %cst_58 = arith.constant 1.000000e+00 : f32
    %301 = vector.broadcast %cst_58 : f32 to vector<1x200xf32>
    %302 = arith.addf %301, %298 : vector<1x200xf32>
    %cst_59 = arith.constant 1.000000e+00 : f32
    %303 = vector.broadcast %cst_59 : f32 to vector<1x200xf32>
    %304 = arith.divf %303, %302 : vector<1x200xf32>
    %cst_60 = arith.constant 1.000000e+00 : f32
    %305 = vector.broadcast %cst_60 : f32 to vector<1x200xf32>
    %306 = arith.addf %305, %298 : vector<1x200xf32>
    %307 = arith.divf %298, %306 : vector<1x200xf32>
    %308 = arith.select %300, %304, %307 : vector<1x200xi1>, vector<1x200xf32>
    %c0_61 = arith.constant 0 : index
    %c0_62 = arith.constant 0 : index
    %309 = vector.load %arg3[%c0_61, %c0_62] : memref<1x200xf32, #tpu.memory_space<vmem>>, vector<1x200xf32>
    tpu.vector_store %arg3[%c0_61, %c0_62], %308 {strides = array<i32>} : memref<1x200xf32, #tpu.memory_space<vmem>>, vector<1x200xf32>,
    return
  }
  func.func @transform_0(%arg0: i32) -> (i32, i32) {
    %c0_i32 = arith.constant 0 : i32
    %c0_i32_0 = arith.constant 0 : i32
    return %c0_i32, %arg0 : i32, i32
  }
  func.func @transform_1(%arg0: i32) -> (i32, i32) {
    %c0_i32 = arith.constant 0 : i32
    %c0_i32_0 = arith.constant 0 : i32
    %c0_i32_1 = arith.constant 0 : i32
    return %c0_i32, %c0_i32_0 : i32, i32
  }
  func.func @transform_2(%arg0: i32) -> (i32, i32) {
    %c0_i32 = arith.constant 0 : i32
    %c0_i32_0 = arith.constant 0 : i32
    return %c0_i32, %arg0 : i32, i32
  }
}

</mosaic_0001>

<llo_original>
// kernel: tpu_custom_call.1
$region0: #{tpu_custom_call.1}
  #allocation0 [shape = 'u32[]', space=smem, size = 0x4, offset = 0x4, fixed_abs, tag = 'smem constant byte address 0x4 - core index']
  #allocation1 [shape = 'u32[144,128]{1,0:T(1,128)}', space=vmem, size = 0x12000, scoped, tag = 'internal scratch']
  %s0 = inlined_call_operand.hbm [shape: f32[2,200], index: 0, kind: input, shape index: {}]
  %s1 = inlined_call_operand.hbm [shape: f32[32,53], index: 1, kind: input, shape index: {}]
  %s2 = inlined_call_operand.hbm [shape: f32[1,200], index: 2, kind: output, shape index: {}]
  %s3 = sld [smem:[#allocation0]]
  $region26: #{tpu_custom_call.1} parent=0
    _
  %s5 = ssub.s32 1, %s3
  %s6 = scalar_select 0, %s5, %s3
  $region1: #{tpu_custom_call.1} parent=0
    #allocation2 [shape = 'u8[2048]{0}', space=vmem, size = 0x800, scoped, tag = 'input window, operand 0, single buffered']
    #allocation3 [shape = 's32[1]{0}', space=sflag, size = 0x4, scoped, tag = 'scoped memory for tpu_custom_call.1']
    #allocation4 [shape = 's32[1]{0}', space=sflag, size = 0x4, scoped, tag = 'scoped memory for tpu_custom_call.1']
    #allocation5 [shape = 'u8[16384]{0}', space=vmem, size = 0x4000, scoped, tag = 'input window, operand 1, single buffered']
    #allocation6 [shape = 's32[1]{0}', space=sflag, size = 0x4, scoped, tag = 'scoped memory for tpu_custom_call.1']
    #allocation7 [shape = 'u8[1024]{0}', space=vmem, size = 0x400, scoped, tag = 'output window, operand 0, single buffered']
    %7 = vsyncpa [#allocation3], 0
    %8 = vsyncpa [#allocation6], 0
    %9 = vsyncpa [#allocation4], 0
    // Predicated region
    $region2: #{tpu_custom_call.1} parent=1 // pred_check
      _
    $region3: #{tpu_custom_call.1} parent=1 // pred_check_branch
      %11 = sbr.rel (0) target = $region5
    $region4: #{tpu_custom_call.1} parent=1 // pred_region
      %s13 = ssub.s32 64, 64
      %14 = vsyncadd [#allocation3], %s13
      %s16 = sshll.u32 [#allocation2], 4
      %s17 = int_to_ptr.vmem [resolvable:$true] %s16
      %19 = dma.hbm_to_vmem [thread:$0]  %s0, 64, %s17, [#allocation3]
    $region5: #{tpu_custom_call.1} parent=1 // pred_fallthru
      _
    // Predicated region
    $region6: #{tpu_custom_call.1} parent=1 // pred_check
      _
    $region7: #{tpu_custom_call.1} parent=1 // pred_check_branch
      %21 = sbr.rel (0) target = $region9
    $region8: #{tpu_custom_call.1} parent=1 // pred_region
      %s23 = ssub.s32 512, 512
      %24 = vsyncadd [#allocation6], %s23
      %s25 = sshll.u32 [#allocation5], 4
      %s26 = int_to_ptr.vmem [resolvable:$true] %s25
      %31 = dma.hbm_to_vmem [thread:$0]  %s1, 512, %s26, [#allocation6], 128, 128, 8
    $region9: #{tpu_custom_call.1} parent=1 // pred_fallthru
      _
    // Predicated region
    $region10: #{tpu_custom_call.1} parent=1 // pred_check
      _
    $region11: #{tpu_custom_call.1} parent=1 // pred_check_branch
      %33 = sbr.rel (0) target = $region13
    $region12: #{tpu_custom_call.1} parent=1 // pred_region
      %34 = dma.done [#allocation3], 64
    $region13: #{tpu_custom_call.1} parent=1 // pred_fallthru
      _
    // Predicated region
    $region14: #{tpu_custom_call.1} parent=1 // pred_check
      _
    $region15: #{tpu_custom_call.1} parent=1 // pred_check_branch
      %36 = sbr.rel (0) target = $region17
    $region16: #{tpu_custom_call.1} parent=1 // pred_region
      %37 = dma.done [#allocation6], 512
    $region17: #{tpu_custom_call.1} parent=1 // pred_fallthru
      _
    %v38 = vld [vmem:[#allocation2] sm:$0xf]
    %v39 = vld [vmem:[#allocation5] sm:$0xff]
    %v40 = vld [vmem:[#allocation5 + $0x8] sm:$0xff]
    %v41 = vld [vmem:[#allocation5 + $0x10] sm:$0xff]
    %v42 = vld [vmem:[#allocation5 + $0x18] sm:$0xff]
    %44 = vset.pattern.permute.xlu0 0
    %45 = vperm.xlu0 %44, %v39
    %v46 = vpop.permute.xlu0 %45
    %49 = vset.pattern.permute.xlu0 0
    %50 = vperm.xlu0 %49, %v40
    %v51 = vpop.permute.xlu0 %50
    %54 = vset.pattern.permute.xlu0 0
    %55 = vperm.xlu0 %54, %v41
    %v56 = vpop.permute.xlu0 %55
    %59 = vset.pattern.permute.xlu0 0
    %60 = vperm.xlu0 %59, %v42
    %v61 = vpop.permute.xlu0 %60
    %v64 = vlaneseq
    %v65 = vshrl.u32 %v64, 7
    %v66 = vsub.s32 0, %v65
    %v67 = vrot.slane %v38, %v66
    %v68 = vlaneseq
    %v69 = vshrl.u32 %v68, 7
    %v70 = vsub.s32 2, %v69
    %v71 = vrot.slane %v38, %v70
    %v74 = vlaneseq
    %v75 = vshrl.u32 %v74, 7
    %v76 = vsub.s32 0, %v75
    %v77 = vrot.slane %v67, %v76
    %v78 = vlaneseq
    %v79 = vshrl.u32 %v78, 7
    %v80 = vsub.s32 0, %v79
    %v81 = vrot.slane %v71, %v80
    %v82 = vmul.f32 %v46, %v77
    %v83 = vmul.f32 %v46, %v81
    %v84 = vmul.f32 %v51, %v77
    %v85 = vmul.f32 %v51, %v81
    %v86 = vmul.f32 %v56, %v77
    %v87 = vmul.f32 %v56, %v81
    %v88 = vmul.f32 %v61, %v77
    %v89 = vmul.f32 %v61, %v81
    %90 = vset.pattern.permute.xlu0 2
    %91 = vperm.xlu0 %90, %v39
    %v92 = vpop.permute.xlu0 %91
    %94 = vset.pattern.permute.xlu0 2
    %95 = vperm.xlu0 %94, %v40
    %v96 = vpop.permute.xlu0 %95
    %98 = vset.pattern.permute.xlu0 2
    %99 = vperm.xlu0 %98, %v41
    %v100 = vpop.permute.xlu0 %99
    %102 = vset.pattern.permute.xlu0 2
    %103 = vperm.xlu0 %102, %v42
    %v104 = vpop.permute.xlu0 %103
    %v106 = vadd.f32 %v82, %v92
    %v107 = vadd.f32 %v83, %v92
    %v108 = vadd.f32 %v84, %v96
    %v109 = vadd.f32 %v85, %v96
    %v110 = vadd.f32 %v86, %v100
    %v111 = vadd.f32 %v87, %v100
    %v112 = vadd.f32 %v88, %v104
    %v113 = vadd.f32 %v89, %v104
    %114 = vset.pattern.permute.xlu0 1
    %115 = vperm.xlu0 %114, %v39
    %v116 = vpop.permute.xlu0 %115
    %118 = vset.pattern.permute.xlu0 1
    %119 = vperm.xlu0 %118, %v40
    %v120 = vpop.permute.xlu0 %119
    %122 = vset.pattern.permute.xlu0 1
    %123 = vperm.xlu0 %122, %v41
    %v124 = vpop.permute.xlu0 %123
    %126 = vset.pattern.permute.xlu0 1
    %127 = vperm.xlu0 %126, %v42
    %v128 = vpop.permute.xlu0 %127
    %v130 = vlaneseq
    %v131 = vshrl.u32 %v130, 7
    %v132 = vsub.s32 1, %v131
    %v133 = vrot.slane %v38, %v132
    %v134 = vlaneseq
    %v135 = vshrl.u32 %v134, 7
    %v136 = vsub.s32 3, %v135
    %v137 = vrot.slane %v38, %v136
    %v140 = vlaneseq
    %v141 = vshrl.u32 %v140, 7
    %v142 = vsub.s32 1, %v141
    %v143 = vrot.slane %v133, %v142
    %v144 = vlaneseq
    %v145 = vshrl.u32 %v144, 7
    %v146 = vsub.s32 1, %v145
    %v147 = vrot.slane %v137, %v146
    %v148 = vmul.f32 %v116, %v143
    %v149 = vmul.f32 %v116, %v147
    %v150 = vmul.f32 %v120, %v143
    %v151 = vmul.f32 %v120, %v147
    %v152 = vmul.f32 %v124, %v143
    %v153 = vmul.f32 %v124, %v147
    %v154 = vmul.f32 %v128, %v143
    %v155 = vmul.f32 %v128, %v147
    %v156 = vadd.f32 %v106, %v148
    %v157 = vadd.f32 %v107, %v149
    %v158 = vadd.f32 %v108, %v150
    %v159 = vadd.f32 %v109, %v151
    %v160 = vadd.f32 %v110, %v152
    %v161 = vadd.f32 %v111, %v153
    %v162 = vadd.f32 %v112, %v154
    %v163 = vadd.f32 %v113, %v155
    %v164 = vmax.f32 %v156, 0.0
    %v165 = vmax.f32 %v157, 0.0
    %v166 = vmax.f32 %v158, 0.0
    %v167 = vmax.f32 %v159, 0.0
    %v168 = vmax.f32 %v160, 0.0
    %v169 = vmax.f32 %v161, 0.0
    %v170 = vmax.f32 %v162, 0.0
    %v171 = vmax.f32 %v163, 0.0
    %v172 = vld [vmem:[#allocation5] sm:$0xff]
    %v173 = vld [vmem:[#allocation5 + $0x8] sm:$0xff]
    %175 = vset.pattern.permute.xlu0 3
    %176 = vperm.xlu0 %175, %v172
    %v177 = vpop.permute.xlu0 %176
    %180 = vset.pattern.permute.xlu0 3
    %181 = vperm.xlu0 %180, %v173
    %v182 = vpop.permute.xlu0 %181
    %v184 = vlaneseq
    %v185 = vshrl.u32 %v184, 7
    %v186 = vsub.s32 0, %v185
    %v187 = vrot.slane %v164, %v186
    %v188 = vlaneseq
    %v189 = vshrl.u32 %v188, 7
    %v190 = vsub.s32 0, %v189
    %v191 = vrot.slane %v165, %v190
    %v192 = vmul.f32 %v177, %v187
    %v193 = vmul.f32 %v177, %v191
    %v194 = vmul.f32 %v182, %v187
    %v195 = vmul.f32 %v182, %v191
    %196 = vset.pattern.permute.xlu0 35
    %197 = vperm.xlu0 %196, %v172
    %v198 = vpop.permute.xlu0 %197
    %200 = vset.pattern.permute.xlu0 35
    %201 = vperm.xlu0 %200, %v173
    %v202 = vpop.permute.xlu0 %201
    %v204 = vadd.f32 %v192, %v198
    %v205 = vadd.f32 %v193, %v198
    %v206 = vadd.f32 %v194, %v202
    %v207 = vadd.f32 %v195, %v202
    %208 = vset.pattern.permute.xlu0 4
    %209 = vperm.xlu0 %208, %v172
    %v210 = vpop.permute.xlu0 %209
    %212 = vset.pattern.permute.xlu0 4
    %213 = vperm.xlu0 %212, %v173
    %v214 = vpop.permute.xlu0 %213
    %v216 = vlaneseq
    %v217 = vshrl.u32 %v216, 7
    %v218 = vsub.s32 1, %v217
    %v219 = vrot.slane %v164, %v218
    %v220 = vlaneseq
    %v221 = vshrl.u32 %v220, 7
    %v222 = vsub.s32 1, %v221
    %v223 = vrot.slane %v165, %v222
    %v224 = vmul.f32 %v210, %v219
    %v225 = vmul.f32 %v210, %v223
    %v226 = vmul.f32 %v214, %v219
    %v227 = vmul.f32 %v214, %v223
    %v228 = vadd.f32 %v204, %v224
    %v229 = vadd.f32 %v205, %v225
    %v230 = vadd.f32 %v206, %v226
    %v231 = vadd.f32 %v207, %v227
    %232 = vset.pattern.permute.xlu0 5
    %233 = vperm.xlu0 %232, %v172
    %v234 = vpop.permute.xlu0 %233
    %236 = vset.pattern.permute.xlu0 5
    %237 = vperm.xlu0 %236, %v173
    %v238 = vpop.permute.xlu0 %237
    %v240 = vlaneseq
    %v241 = vshrl.u32 %v240, 7
    %v242 = vsub.s32 2, %v241
    %v243 = vrot.slane %v164, %v242
    %v244 = vlaneseq
    %v245 = vshrl.u32 %v244, 7
    %v246 = vsub.s32 2, %v245
    %v247 = vrot.slane %v165, %v246
    %v248 = vmul.f32 %v234, %v243
    %v249 = vmul.f32 %v234, %v247
    %v250 = vmul.f32 %v238, %v243
    %v251 = vmul.f32 %v238, %v247
    %v252 = vadd.f32 %v228, %v248
    %v253 = vadd.f32 %v229, %v249
    %v254 = vadd.f32 %v230, %v250
    %v255 = vadd.f32 %v231, %v251
    %256 = vset.pattern.permute.xlu0 6
    %257 = vperm.xlu0 %256, %v172
    %v258 = vpop.permute.xlu0 %257
    %260 = vset.pattern.permute.xlu0 6
    %261 = vperm.xlu0 %260, %v173
    %v262 = vpop.permute.xlu0 %261
    %v264 = vlaneseq
    %v265 = vshrl.u32 %v264, 7
    %v266 = vsub.s32 3, %v265
    %v267 = vrot.slane %v164, %v266
    %v268 = vlaneseq
    %v269 = vshrl.u32 %v268, 7
    %v270 = vsub.s32 3, %v269
    %v271 = vrot.slane %v165, %v270
    %v272 = vmul.f32 %v258, %v267
    %v273 = vmul.f32 %v258, %v271
    %v274 = vmul.f32 %v262, %v267
    %v275 = vmul.f32 %v262, %v271
    %v276 = vadd.f32 %v252, %v272
    %v277 = vadd.f32 %v253, %v273
    %v278 = vadd.f32 %v254, %v274
    %v279 = vadd.f32 %v255, %v275
    %280 = vset.pattern.permute.xlu0 7
    %281 = vperm.xlu0 %280, %v172
    %v282 = vpop.permute.xlu0 %281
    %284 = vset.pattern.permute.xlu0 7
    %285 = vperm.xlu0 %284, %v173
    %v286 = vpop.permute.xlu0 %285
    %v288 = vlaneseq
    %v289 = vshrl.u32 %v288, 7
    %v290 = vsub.s32 4, %v289
    %v291 = vrot.slane %v164, %v290
    %v292 = vlaneseq
    %v293 = vshrl.u32 %v292, 7
    %v294 = vsub.s32 4, %v293
    %v295 = vrot.slane %v165, %v294
    %v296 = vmul.f32 %v282, %v291
    %v297 = vmul.f32 %v282, %v295
    %v298 = vmul.f32 %v286, %v291
    %v299 = vmul.f32 %v286, %v295
    %v300 = vadd.f32 %v276, %v296
    %v301 = vadd.f32 %v277, %v297
    %v302 = vadd.f32 %v278, %v298
    %v303 = vadd.f32 %v279, %v299
    %304 = vset.pattern.permute.xlu0 8
    %305 = vperm.xlu0 %304, %v172
    %v306 = vpop.permute.xlu0 %305
    %308 = vset.pattern.permute.xlu0 8
    %309 = vperm.xlu0 %308, %v173
    %v310 = vpop.permute.xlu0 %309
    %v312 = vlaneseq
    %v313 = vshrl.u32 %v312, 7
    %v314 = vsub.s32 5, %v313
    %v315 = vrot.slane %v164, %v314
    %v316 = vlaneseq
    %v317 = vshrl.u32 %v316, 7
    %v318 = vsub.s32 5, %v317
    %v319 = vrot.slane %v165, %v318
    %v320 = vmul.f32 %v306, %v315
    %v321 = vmul.f32 %v306, %v319
    %v322 = vmul.f32 %v310, %v315
    %v323 = vmul.f32 %v310, %v319
    %v324 = vadd.f32 %v300, %v320
    %v325 = vadd.f32 %v301, %v321
    %v326 = vadd.f32 %v302, %v322
    %v327 = vadd.f32 %v303, %v323
    %328 = vset.pattern.permute.xlu0 9
    %329 = vperm.xlu0 %328, %v172
    %v330 = vpop.permute.xlu0 %329
    %332 = vset.pattern.permute.xlu0 9
    %333 = vperm.xlu0 %332, %v173
    %v334 = vpop.permute.xlu0 %333
    %v336 = vlaneseq
    %v337 = vshrl.u32 %v336, 7
    %v338 = vsub.s32 6, %v337
    %v339 = vrot.slane %v164, %v338
    %v340 = vlaneseq
    %v341 = vshrl.u32 %v340, 7
    %v342 = vsub.s32 6, %v341
    %v343 = vrot.slane %v165, %v342
    %v344 = vmul.f32 %v330, %v339
    %v345 = vmul.f32 %v330, %v343
    %v346 = vmul.f32 %v334, %v339
    %v347 = vmul.f32 %v334, %v343
    %v348 = vadd.f32 %v324, %v344
    %v349 = vadd.f32 %v325, %v345
    %v350 = vadd.f32 %v326, %v346
    %v351 = vadd.f32 %v327, %v347
    %352 = vset.pattern.permute.xlu0 10
    %353 = vperm.xlu0 %352, %v172
    %v354 = vpop.permute.xlu0 %353
    %356 = vset.pattern.permute.xlu0 10
    %357 = vperm.xlu0 %356, %v173
    %v358 = vpop.permute.xlu0 %357
    %v360 = vlaneseq
    %v361 = vshrl.u32 %v360, 7
    %v362 = vsub.s32 7, %v361
    %v363 = vrot.slane %v164, %v362
    %v364 = vlaneseq
    %v365 = vshrl.u32 %v364, 7
    %v366 = vsub.s32 7, %v365
    %v367 = vrot.slane %v165, %v366
    %v368 = vmul.f32 %v354, %v363
    %v369 = vmul.f32 %v354, %v367
    %v370 = vmul.f32 %v358, %v363
    %v371 = vmul.f32 %v358, %v367
    %v372 = vadd.f32 %v348, %v368
    %v373 = vadd.f32 %v349, %v369
    %v374 = vadd.f32 %v350, %v370
    %v375 = vadd.f32 %v351, %v371
    %376 = vset.pattern.permute.xlu0 11
    %377 = vperm.xlu0 %376, %v172
    %v378 = vpop.permute.xlu0 %377
    %380 = vset.pattern.permute.xlu0 11
    %381 = vperm.xlu0 %380, %v173
    %v382 = vpop.permute.xlu0 %381
    %v384 = vlaneseq
    %v385 = vshrl.u32 %v384, 7
    %v386 = vsub.s32 0, %v385
    %v387 = vrot.slane %v166, %v386
    %v388 = vlaneseq
    %v389 = vshrl.u32 %v388, 7
    %v390 = vsub.s32 0, %v389
    %v391 = vrot.slane %v167, %v390
    %v392 = vmul.f32 %v378, %v387
    %v393 = vmul.f32 %v378, %v391
    %v394 = vmul.f32 %v382, %v387
    %v395 = vmul.f32 %v382, %v391
    %v396 = vadd.f32 %v372, %v392
    %v397 = vadd.f32 %v373, %v393
    %v398 = vadd.f32 %v374, %v394
    %v399 = vadd.f32 %v375, %v395
    %400 = vset.pattern.permute.xlu0 12
    %401 = vperm.xlu0 %400, %v172
    %v402 = vpop.permute.xlu0 %401
    %404 = vset.pattern.permute.xlu0 12
    %405 = vperm.xlu0 %404, %v173
    %v406 = vpop.permute.xlu0 %405
    %v408 = vlaneseq
    %v409 = vshrl.u32 %v408, 7
    %v410 = vsub.s32 1, %v409
    %v411 = vrot.slane %v166, %v410
    %v412 = vlaneseq
    %v413 = vshrl.u32 %v412, 7
    %v414 = vsub.s32 1, %v413
    %v415 = vrot.slane %v167, %v414
    %v416 = vmul.f32 %v402, %v411
    %v417 = vmul.f32 %v402, %v415
    %v418 = vmul.f32 %v406, %v411
    %v419 = vmul.f32 %v406, %v415
    %v420 = vadd.f32 %v396, %v416
    %v421 = vadd.f32 %v397, %v417
    %v422 = vadd.f32 %v398, %v418
    %v423 = vadd.f32 %v399, %v419
    %424 = vset.pattern.permute.xlu0 13
    %425 = vperm.xlu0 %424, %v172
    %v426 = vpop.permute.xlu0 %425
    %428 = vset.pattern.permute.xlu0 13
    %429 = vperm.xlu0 %428, %v173
    %v430 = vpop.permute.xlu0 %429
    %v432 = vlaneseq
    %v433 = vshrl.u32 %v432, 7
    %v434 = vsub.s32 2, %v433
    %v435 = vrot.slane %v166, %v434
    %v436 = vlaneseq
    %v437 = vshrl.u32 %v436, 7
    %v438 = vsub.s32 2, %v437
    %v439 = vrot.slane %v167, %v438
    %v440 = vmul.f32 %v426, %v435
    %v441 = vmul.f32 %v426, %v439
    %v442 = vmul.f32 %v430, %v435
    %v443 = vmul.f32 %v430, %v439
    %v444 = vadd.f32 %v420, %v440
    %v445 = vadd.f32 %v421, %v441
    %v446 = vadd.f32 %v422, %v442
    %v447 = vadd.f32 %v423, %v443
    %448 = vset.pattern.permute.xlu0 14
    %449 = vperm.xlu0 %448, %v172
    %v450 = vpop.permute.xlu0 %449
    %452 = vset.pattern.permute.xlu0 14
    %453 = vperm.xlu0 %452, %v173
    %v454 = vpop.permute.xlu0 %453
    %v456 = vlaneseq
    %v457 = vshrl.u32 %v456, 7
    %v458 = vsub.s32 3, %v457
    %v459 = vrot.slane %v166, %v458
    %v460 = vlaneseq
    %v461 = vshrl.u32 %v460, 7
    %v462 = vsub.s32 3, %v461
    %v463 = vrot.slane %v167, %v462
    %v464 = vmul.f32 %v450, %v459
    %v465 = vmul.f32 %v450, %v463
    %v466 = vmul.f32 %v454, %v459
    %v467 = vmul.f32 %v454, %v463
    %v468 = vadd.f32 %v444, %v464
    %v469 = vadd.f32 %v445, %v465
    %v470 = vadd.f32 %v446, %v466
    %v471 = vadd.f32 %v447, %v467
    %472 = vset.pattern.permute.xlu0 15
    %473 = vperm.xlu0 %472, %v172
    %v474 = vpop.permute.xlu0 %473
    %476 = vset.pattern.permute.xlu0 15
    %477 = vperm.xlu0 %476, %v173
    %v478 = vpop.permute.xlu0 %477
    %v480 = vlaneseq
    %v481 = vshrl.u32 %v480, 7
    %v482 = vsub.s32 4, %v481
    %v483 = vrot.slane %v166, %v482
    %v484 = vlaneseq
    %v485 = vshrl.u32 %v484, 7
    %v486 = vsub.s32 4, %v485
    %v487 = vrot.slane %v167, %v486
    %v488 = vmul.f32 %v474, %v483
    %v489 = vmul.f32 %v474, %v487
    %v490 = vmul.f32 %v478, %v483
    %v491 = vmul.f32 %v478, %v487
    %v492 = vadd.f32 %v468, %v488
    %v493 = vadd.f32 %v469, %v489
    %v494 = vadd.f32 %v470, %v490
    %v495 = vadd.f32 %v471, %v491
    %496 = vset.pattern.permute.xlu0 16
    %497 = vperm.xlu0 %496, %v172
    %v498 = vpop.permute.xlu0 %497
    %500 = vset.pattern.permute.xlu0 16
    %501 = vperm.xlu0 %500, %v173
    %v502 = vpop.permute.xlu0 %501
    %v504 = vlaneseq
    %v505 = vshrl.u32 %v504, 7
    %v506 = vsub.s32 5, %v505
    %v507 = vrot.slane %v166, %v506
    %v508 = vlaneseq
    %v509 = vshrl.u32 %v508, 7
    %v510 = vsub.s32 5, %v509
    %v511 = vrot.slane %v167, %v510
    %v512 = vmul.f32 %v498, %v507
    %v513 = vmul.f32 %v498, %v511
    %v514 = vmul.f32 %v502, %v507
    %v515 = vmul.f32 %v502, %v511
    %v516 = vadd.f32 %v492, %v512
    %v517 = vadd.f32 %v493, %v513
    %v518 = vadd.f32 %v494, %v514
    %v519 = vadd.f32 %v495, %v515
    %520 = vset.pattern.permute.xlu0 17
    %521 = vperm.xlu0 %520, %v172
    %v522 = vpop.permute.xlu0 %521
    %524 = vset.pattern.permute.xlu0 17
    %525 = vperm.xlu0 %524, %v173
    %v526 = vpop.permute.xlu0 %525
    %v528 = vlaneseq
    %v529 = vshrl.u32 %v528, 7
    %v530 = vsub.s32 6, %v529
    %v531 = vrot.slane %v166, %v530
    %v532 = vlaneseq
    %v533 = vshrl.u32 %v532, 7
    %v534 = vsub.s32 6, %v533
    %v535 = vrot.slane %v167, %v534
    %v536 = vmul.f32 %v522, %v531
    %v537 = vmul.f32 %v522, %v535
    %v538 = vmul.f32 %v526, %v531
    %v539 = vmul.f32 %v526, %v535
    %v540 = vadd.f32 %v516, %v536
    %v541 = vadd.f32 %v517, %v537
    %v542 = vadd.f32 %v518, %v538
    %v543 = vadd.f32 %v519, %v539
    %544 = vset.pattern.permute.xlu0 18
    %545 = vperm.xlu0 %544, %v172
    %v546 = vpop.permute.xlu0 %545
    %548 = vset.pattern.permute.xlu0 18
    %549 = vperm.xlu0 %548, %v173
    %v550 = vpop.permute.xlu0 %549
    %v552 = vlaneseq
    %v553 = vshrl.u32 %v552, 7
    %v554 = vsub.s32 7, %v553
    %v555 = vrot.slane %v166, %v554
    %v556 = vlaneseq
    %v557 = vshrl.u32 %v556, 7
    %v558 = vsub.s32 7, %v557
    %v559 = vrot.slane %v167, %v558
    %v560 = vmul.f32 %v546, %v555
    %v561 = vmul.f32 %v546, %v559
    %v562 = vmul.f32 %v550, %v555
    %v563 = vmul.f32 %v550, %v559
    %v564 = vadd.f32 %v540, %v560
    %v565 = vadd.f32 %v541, %v561
    %v566 = vadd.f32 %v542, %v562
    %v567 = vadd.f32 %v543, %v563
    %568 = vset.pattern.permute.xlu0 19
    %569 = vperm.xlu0 %568, %v172
    %v570 = vpop.permute.xlu0 %569
    %572 = vset.pattern.permute.xlu0 19
    %573 = vperm.xlu0 %572, %v173
    %v574 = vpop.permute.xlu0 %573
    %v576 = vlaneseq
    %v577 = vshrl.u32 %v576, 7
    %v578 = vsub.s32 0, %v577
    %v579 = vrot.slane %v168, %v578
    %v580 = vlaneseq
    %v581 = vshrl.u32 %v580, 7
    %v582 = vsub.s32 0, %v581
    %v583 = vrot.slane %v169, %v582
    %v584 = vmul.f32 %v570, %v579
    %v585 = vmul.f32 %v570, %v583
    %v586 = vmul.f32 %v574, %v579
    %v587 = vmul.f32 %v574, %v583
    %v588 = vadd.f32 %v564, %v584
    %v589 = vadd.f32 %v565, %v585
    %v590 = vadd.f32 %v566, %v586
    %v591 = vadd.f32 %v567, %v587
    %592 = vset.pattern.permute.xlu0 20
    %593 = vperm.xlu0 %592, %v172
    %v594 = vpop.permute.xlu0 %593
    %596 = vset.pattern.permute.xlu0 20
    %597 = vperm.xlu0 %596, %v173
    %v598 = vpop.permute.xlu0 %597
    %v600 = vlaneseq
    %v601 = vshrl.u32 %v600, 7
    %v602 = vsub.s32 1, %v601
    %v603 = vrot.slane %v168, %v602
    %v604 = vlaneseq
    %v605 = vshrl.u32 %v604, 7
    %v606 = vsub.s32 1, %v605
    %v607 = vrot.slane %v169, %v606
    %v608 = vmul.f32 %v594, %v603
    %v609 = vmul.f32 %v594, %v607
    %v610 = vmul.f32 %v598, %v603
    %v611 = vmul.f32 %v598, %v607
    %v612 = vadd.f32 %v588, %v608
    %v613 = vadd.f32 %v589, %v609
    %v614 = vadd.f32 %v590, %v610
    %v615 = vadd.f32 %v591, %v611
    %616 = vset.pattern.permute.xlu0 21
    %617 = vperm.xlu0 %616, %v172
    %v618 = vpop.permute.xlu0 %617
    %620 = vset.pattern.permute.xlu0 21
    %621 = vperm.xlu0 %620, %v173
    %v622 = vpop.permute.xlu0 %621
    %v624 = vlaneseq
    %v625 = vshrl.u32 %v624, 7
    %v626 = vsub.s32 2, %v625
    %v627 = vrot.slane %v168, %v626
    %v628 = vlaneseq
    %v629 = vshrl.u32 %v628, 7
    %v630 = vsub.s32 2, %v629
    %v631 = vrot.slane %v169, %v630
    %v632 = vmul.f32 %v618, %v627
    %v633 = vmul.f32 %v618, %v631
    %v634 = vmul.f32 %v622, %v627
    %v635 = vmul.f32 %v622, %v631
    %v636 = vadd.f32 %v612, %v632
    %v637 = vadd.f32 %v613, %v633
    %v638 = vadd.f32 %v614, %v634
    %v639 = vadd.f32 %v615, %v635
    %640 = vset.pattern.permute.xlu0 22
    %641 = vperm.xlu0 %640, %v172
    %v642 = vpop.permute.xlu0 %641
    %644 = vset.pattern.permute.xlu0 22
    %645 = vperm.xlu0 %644, %v173
    %v646 = vpop.permute.xlu0 %645
    %v648 = vlaneseq
    %v649 = vshrl.u32 %v648, 7
    %v650 = vsub.s32 3, %v649
    %v651 = vrot.slane %v168, %v650
    %v652 = vlaneseq
    %v653 = vshrl.u32 %v652, 7
    %v654 = vsub.s32 3, %v653
    %v655 = vrot.slane %v169, %v654
    %v656 = vmul.f32 %v642, %v651
    %v657 = vmul.f32 %v642, %v655
    %v658 = vmul.f32 %v646, %v651
    %v659 = vmul.f32 %v646, %v655
    %v660 = vadd.f32 %v636, %v656
    %v661 = vadd.f32 %v637, %v657
    %v662 = vadd.f32 %v638, %v658
    %v663 = vadd.f32 %v639, %v659
    %664 = vset.pattern.permute.xlu0 23
    %665 = vperm.xlu0 %664, %v172
    %v666 = vpop.permute.xlu0 %665
    %668 = vset.pattern.permute.xlu0 23
    %669 = vperm.xlu0 %668, %v173
    %v670 = vpop.permute.xlu0 %669
    %v672 = vlaneseq
    %v673 = vshrl.u32 %v672, 7
    %v674 = vsub.s32 4, %v673
    %v675 = vrot.slane %v168, %v674
    %v676 = vlaneseq
    %v677 = vshrl.u32 %v676, 7
    %v678 = vsub.s32 4, %v677
    %v679 = vrot.slane %v169, %v678
    %v680 = vmul.f32 %v666, %v675
    %v681 = vmul.f32 %v666, %v679
    %v682 = vmul.f32 %v670, %v675
    %v683 = vmul.f32 %v670, %v679
    %v684 = vadd.f32 %v660, %v680
    %v685 = vadd.f32 %v661, %v681
    %v686 = vadd.f32 %v662, %v682
    %v687 = vadd.f32 %v663, %v683
    %688 = vset.pattern.permute.xlu0 24
    %689 = vperm.xlu0 %688, %v172
    %v690 = vpop.permute.xlu0 %689
    %692 = vset.pattern.permute.xlu0 24
    %693 = vperm.xlu0 %692, %v173
    %v694 = vpop.permute.xlu0 %693
    %v696 = vlaneseq
    %v697 = vshrl.u32 %v696, 7
    %v698 = vsub.s32 5, %v697
    %v699 = vrot.slane %v168, %v698
    %v700 = vlaneseq
    %v701 = vshrl.u32 %v700, 7
    %v702 = vsub.s32 5, %v701
    %v703 = vrot.slane %v169, %v702
    %v704 = vmul.f32 %v690, %v699
    %v705 = vmul.f32 %v690, %v703
    %v706 = vmul.f32 %v694, %v699
    %v707 = vmul.f32 %v694, %v703
    %v708 = vadd.f32 %v684, %v704
    %v709 = vadd.f32 %v685, %v705
    %v710 = vadd.f32 %v686, %v706
    %v711 = vadd.f32 %v687, %v707
    %712 = vset.pattern.permute.xlu0 25
    %713 = vperm.xlu0 %712, %v172
    %v714 = vpop.permute.xlu0 %713
    %716 = vset.pattern.permute.xlu0 25
    %717 = vperm.xlu0 %716, %v173
    %v718 = vpop.permute.xlu0 %717
    %v720 = vlaneseq
    %v721 = vshrl.u32 %v720, 7
    %v722 = vsub.s32 6, %v721
    %v723 = vrot.slane %v168, %v722
    %v724 = vlaneseq
    %v725 = vshrl.u32 %v724, 7
    %v726 = vsub.s32 6, %v725
    %v727 = vrot.slane %v169, %v726
    %v728 = vmul.f32 %v714, %v723
    %v729 = vmul.f32 %v714, %v727
    %v730 = vmul.f32 %v718, %v723
    %v731 = vmul.f32 %v718, %v727
    %v732 = vadd.f32 %v708, %v728
    %v733 = vadd.f32 %v709, %v729
    %v734 = vadd.f32 %v710, %v730
    %v735 = vadd.f32 %v711, %v731
    %736 = vset.pattern.permute.xlu0 26
    %737 = vperm.xlu0 %736, %v172
    %v738 = vpop.permute.xlu0 %737
    %740 = vset.pattern.permute.xlu0 26
    %741 = vperm.xlu0 %740, %v173
    %v742 = vpop.permute.xlu0 %741
    %v744 = vlaneseq
    %v745 = vshrl.u32 %v744, 7
    %v746 = vsub.s32 7, %v745
    %v747 = vrot.slane %v168, %v746
    %v748 = vlaneseq
    %v749 = vshrl.u32 %v748, 7
    %v750 = vsub.s32 7, %v749
    %v751 = vrot.slane %v169, %v750
    %v752 = vmul.f32 %v738, %v747
    %v753 = vmul.f32 %v738, %v751
    %v754 = vmul.f32 %v742, %v747
    %v755 = vmul.f32 %v742, %v751
    %v756 = vadd.f32 %v732, %v752
    %v757 = vadd.f32 %v733, %v753
    %v758 = vadd.f32 %v734, %v754
    %v759 = vadd.f32 %v735, %v755
    %760 = vset.pattern.permute.xlu0 27
    %761 = vperm.xlu0 %760, %v172
    %v762 = vpop.permute.xlu0 %761
    %764 = vset.pattern.permute.xlu0 27
    %765 = vperm.xlu0 %764, %v173
    %v766 = vpop.permute.xlu0 %765
    %v768 = vlaneseq
    %v769 = vshrl.u32 %v768, 7
    %v770 = vsub.s32 0, %v769
    %v771 = vrot.slane %v170, %v770
    %v772 = vlaneseq
    %v773 = vshrl.u32 %v772, 7
    %v774 = vsub.s32 0, %v773
    %v775 = vrot.slane %v171, %v774
    %v776 = vmul.f32 %v762, %v771
    %v777 = vmul.f32 %v762, %v775
    %v778 = vmul.f32 %v766, %v771
    %v779 = vmul.f32 %v766, %v775
    %v780 = vadd.f32 %v756, %v776
    %v781 = vadd.f32 %v757, %v777
    %v782 = vadd.f32 %v758, %v778
    %v783 = vadd.f32 %v759, %v779
    %784 = vset.pattern.permute.xlu0 28
    %785 = vperm.xlu0 %784, %v172
    %v786 = vpop.permute.xlu0 %785
    %788 = vset.pattern.permute.xlu0 28
    %789 = vperm.xlu0 %788, %v173
    %v790 = vpop.permute.xlu0 %789
    %v792 = vlaneseq
    %v793 = vshrl.u32 %v792, 7
    %v794 = vsub.s32 1, %v793
    %v795 = vrot.slane %v170, %v794
    %v796 = vlaneseq
    %v797 = vshrl.u32 %v796, 7
    %v798 = vsub.s32 1, %v797
    %v799 = vrot.slane %v171, %v798
    %v800 = vmul.f32 %v786, %v795
    %v801 = vmul.f32 %v786, %v799
    %v802 = vmul.f32 %v790, %v795
    %v803 = vmul.f32 %v790, %v799
    %v804 = vadd.f32 %v780, %v800
    %v805 = vadd.f32 %v781, %v801
    %v806 = vadd.f32 %v782, %v802
    %v807 = vadd.f32 %v783, %v803
    %808 = vset.pattern.permute.xlu0 29
    %809 = vperm.xlu0 %808, %v172
    %v810 = vpop.permute.xlu0 %809
    %812 = vset.pattern.permute.xlu0 29
    %813 = vperm.xlu0 %812, %v173
    %v814 = vpop.permute.xlu0 %813
    %v816 = vlaneseq
    %v817 = vshrl.u32 %v816, 7
    %v818 = vsub.s32 2, %v817
    %v819 = vrot.slane %v170, %v818
    %v820 = vlaneseq
    %v821 = vshrl.u32 %v820, 7
    %v822 = vsub.s32 2, %v821
    %v823 = vrot.slane %v171, %v822
    %v824 = vmul.f32 %v810, %v819
    %v825 = vmul.f32 %v810, %v823
    %v826 = vmul.f32 %v814, %v819
    %v827 = vmul.f32 %v814, %v823
    %v828 = vadd.f32 %v804, %v824
    %v829 = vadd.f32 %v805, %v825
    %v830 = vadd.f32 %v806, %v826
    %v831 = vadd.f32 %v807, %v827
    %832 = vset.pattern.permute.xlu0 30
    %833 = vperm.xlu0 %832, %v172
    %v834 = vpop.permute.xlu0 %833
    %836 = vset.pattern.permute.xlu0 30
    %837 = vperm.xlu0 %836, %v173
    %v838 = vpop.permute.xlu0 %837
    %v840 = vlaneseq
    %v841 = vshrl.u32 %v840, 7
    %v842 = vsub.s32 3, %v841
    %v843 = vrot.slane %v170, %v842
    %v844 = vlaneseq
    %v845 = vshrl.u32 %v844, 7
    %v846 = vsub.s32 3, %v845
    %v847 = vrot.slane %v171, %v846
    %v848 = vmul.f32 %v834, %v843
    %v849 = vmul.f32 %v834, %v847
    %v850 = vmul.f32 %v838, %v843
    %v851 = vmul.f32 %v838, %v847
    %v852 = vadd.f32 %v828, %v848
    %v853 = vadd.f32 %v829, %v849
    %v854 = vadd.f32 %v830, %v850
    %v855 = vadd.f32 %v831, %v851
    %856 = vset.pattern.permute.xlu0 31
    %857 = vperm.xlu0 %856, %v172
    %v858 = vpop.permute.xlu0 %857
    %860 = vset.pattern.permute.xlu0 31
    %861 = vperm.xlu0 %860, %v173
    %v862 = vpop.permute.xlu0 %861
    %v864 = vlaneseq
    %v865 = vshrl.u32 %v864, 7
    %v866 = vsub.s32 4, %v865
    %v867 = vrot.slane %v170, %v866
    %v868 = vlaneseq
    %v869 = vshrl.u32 %v868, 7
    %v870 = vsub.s32 4, %v869
    %v871 = vrot.slane %v171, %v870
    %v872 = vmul.f32 %v858, %v867
    %v873 = vmul.f32 %v858, %v871
    %v874 = vmul.f32 %v862, %v867
    %v875 = vmul.f32 %v862, %v871
    %v876 = vadd.f32 %v852, %v872
    %v877 = vadd.f32 %v853, %v873
    %v878 = vadd.f32 %v854, %v874
    %v879 = vadd.f32 %v855, %v875
    %880 = vset.pattern.permute.xlu0 32
    %881 = vperm.xlu0 %880, %v172
    %v882 = vpop.permute.xlu0 %881
    %884 = vset.pattern.permute.xlu0 32
    %885 = vperm.xlu0 %884, %v173
    %v886 = vpop.permute.xlu0 %885
    %v888 = vlaneseq
    %v889 = vshrl.u32 %v888, 7
    %v890 = vsub.s32 5, %v889
    %v891 = vrot.slane %v170, %v890
    %v892 = vlaneseq
    %v893 = vshrl.u32 %v892, 7
    %v894 = vsub.s32 5, %v893
    %v895 = vrot.slane %v171, %v894
    %v896 = vmul.f32 %v882, %v891
    %v897 = vmul.f32 %v882, %v895
    %v898 = vmul.f32 %v886, %v891
    %v899 = vmul.f32 %v886, %v895
    %v900 = vadd.f32 %v876, %v896
    %v901 = vadd.f32 %v877, %v897
    %v902 = vadd.f32 %v878, %v898
    %v903 = vadd.f32 %v879, %v899
    %904 = vset.pattern.permute.xlu0 33
    %905 = vperm.xlu0 %904, %v172
    %v906 = vpop.permute.xlu0 %905
    %908 = vset.pattern.permute.xlu0 33
    %909 = vperm.xlu0 %908, %v173
    %v910 = vpop.permute.xlu0 %909
    %v912 = vlaneseq
    %v913 = vshrl.u32 %v912, 7
    %v914 = vsub.s32 6, %v913
    %v915 = vrot.slane %v170, %v914
    %v916 = vlaneseq
    %v917 = vshrl.u32 %v916, 7
    %v918 = vsub.s32 6, %v917
    %v919 = vrot.slane %v171, %v918
    %v920 = vmul.f32 %v906, %v915
    %v921 = vmul.f32 %v906, %v919
    %v922 = vmul.f32 %v910, %v915
    %v923 = vmul.f32 %v910, %v919
    %v924 = vadd.f32 %v900, %v920
    %v925 = vadd.f32 %v901, %v921
    %v926 = vadd.f32 %v902, %v922
    %v927 = vadd.f32 %v903, %v923
    %928 = vset.pattern.permute.xlu0 34
    %929 = vperm.xlu0 %928, %v172
    %v930 = vpop.permute.xlu0 %929
    %932 = vset.pattern.permute.xlu0 34
    %933 = vperm.xlu0 %932, %v173
    %v934 = vpop.permute.xlu0 %933
    %v936 = vlaneseq
    %v937 = vshrl.u32 %v936, 7
    %v938 = vsub.s32 7, %v937
    %v939 = vrot.slane %v170, %v938
    %v940 = vlaneseq
    %v941 = vshrl.u32 %v940, 7
    %v942 = vsub.s32 7, %v941
    %v943 = vrot.slane %v171, %v942
    %v944 = vmul.f32 %v930, %v939
    %v945 = vmul.f32 %v930, %v943
    %v946 = vmul.f32 %v934, %v939
    %v947 = vmul.f32 %v934, %v943
    %v948 = vadd.f32 %v924, %v944
    %v949 = vadd.f32 %v925, %v945
    %v950 = vadd.f32 %v926, %v946
    %v951 = vadd.f32 %v927, %v947
    %v952 = vmax.f32 %v948, 0.0
    %v953 = vmax.f32 %v949, 0.0
    %v954 = vmax.f32 %v950, 0.0
    %v955 = vmax.f32 %v951, 0.0
    %v956 = vld [vmem:[#allocation5] sm:$0x1]
    %958 = vset.pattern.permute.xlu0 36
    %959 = vperm.xlu0 %958, %v956
    %v960 = vpop.permute.xlu0 %959
    %v962 = vmul.f32 %v960, %v952
    %v963 = vmul.f32 %v960, %v953
    %964 = vset.pattern.permute.xlu0 52
    %965 = vperm.xlu0 %964, %v956
    %v966 = vpop.permute.xlu0 %965
    %v968 = vadd.f32 %v962, %v966
    %v969 = vadd.f32 %v963, %v966
    %970 = vset.pattern.permute.xlu0 37
    %971 = vperm.xlu0 %970, %v956
    %v972 = vpop.permute.xlu0 %971
    %v976 = vrot.slane %v952, 1
    %v977 = vrot.slane %v953, 1
    %v980 = vmul.f32 %v972, %v976
    %v981 = vmul.f32 %v972, %v977
    %v982 = vadd.f32 %v968, %v980
    %v983 = vadd.f32 %v969, %v981
    %984 = vset.pattern.permute.xlu0 38
    %985 = vperm.xlu0 %984, %v956
    %v986 = vpop.permute.xlu0 %985
    %v988 = vrot.slane %v952, 2
    %v989 = vrot.slane %v953, 2
    %v992 = vmul.f32 %v986, %v988
    %v993 = vmul.f32 %v986, %v989
    %v994 = vadd.f32 %v982, %v992
    %v995 = vadd.f32 %v983, %v993
    %996 = vset.pattern.permute.xlu0 39
    %997 = vperm.xlu0 %996, %v956
    %v998 = vpop.permute.xlu0 %997
    %v1000 = vrot.slane %v952, 3
    %v1001 = vrot.slane %v953, 3
    %v1004 = vmul.f32 %v998, %v1000
    %v1005 = vmul.f32 %v998, %v1001
    %v1006 = vadd.f32 %v994, %v1004
    %v1007 = vadd.f32 %v995, %v1005
    %1008 = vset.pattern.permute.xlu0 40
    %1009 = vperm.xlu0 %1008, %v956
    %v1010 = vpop.permute.xlu0 %1009
    %v1012 = vrot.slane %v952, 4
    %v1013 = vrot.slane %v953, 4
    %v1016 = vmul.f32 %v1010, %v1012
    %v1017 = vmul.f32 %v1010, %v1013
    %v1018 = vadd.f32 %v1006, %v1016
    %v1019 = vadd.f32 %v1007, %v1017
    %1020 = vset.pattern.permute.xlu0 41
    %1021 = vperm.xlu0 %1020, %v956
    %v1022 = vpop.permute.xlu0 %1021
    %v1024 = vrot.slane %v952, 5
    %v1025 = vrot.slane %v953, 5
    %v1028 = vmul.f32 %v1022, %v1024
    %v1029 = vmul.f32 %v1022, %v1025
    %v1030 = vadd.f32 %v1018, %v1028
    %v1031 = vadd.f32 %v1019, %v1029
    %1032 = vset.pattern.permute.xlu0 42
    %1033 = vperm.xlu0 %1032, %v956
    %v1034 = vpop.permute.xlu0 %1033
    %v1036 = vrot.slane %v952, 6
    %v1037 = vrot.slane %v953, 6
    %v1040 = vmul.f32 %v1034, %v1036
    %v1041 = vmul.f32 %v1034, %v1037
    %v1042 = vadd.f32 %v1030, %v1040
    %v1043 = vadd.f32 %v1031, %v1041
    %1044 = vset.pattern.permute.xlu0 43
    %1045 = vperm.xlu0 %1044, %v956
    %v1046 = vpop.permute.xlu0 %1045
    %v1048 = vrot.slane %v952, 7
    %v1049 = vrot.slane %v953, 7
    %v1052 = vmul.f32 %v1046, %v1048
    %v1053 = vmul.f32 %v1046, %v1049
    %v1054 = vadd.f32 %v1042, %v1052
    %v1055 = vadd.f32 %v1043, %v1053
    %1056 = vset.pattern.permute.xlu0 44
    %1057 = vperm.xlu0 %1056, %v956
    %v1058 = vpop.permute.xlu0 %1057
    %v1060 = vmul.f32 %v1058, %v954
    %v1061 = vmul.f32 %v1058, %v955
    %v1062 = vadd.f32 %v1054, %v1060
    %v1063 = vadd.f32 %v1055, %v1061
    %1064 = vset.pattern.permute.xlu0 45
    %1065 = vperm.xlu0 %1064, %v956
    %v1066 = vpop.permute.xlu0 %1065
    %v1070 = vrot.slane %v954, 1
    %v1071 = vrot.slane %v955, 1
    %v1074 = vmul.f32 %v1066, %v1070
    %v1075 = vmul.f32 %v1066, %v1071
    %v1076 = vadd.f32 %v1062, %v1074
    %v1077 = vadd.f32 %v1063, %v1075
    %1078 = vset.pattern.permute.xlu0 46
    %1079 = vperm.xlu0 %1078, %v956
    %v1080 = vpop.permute.xlu0 %1079
    %v1082 = vrot.slane %v954, 2
    %v1083 = vrot.slane %v955, 2
    %v1086 = vmul.f32 %v1080, %v1082
    %v1087 = vmul.f32 %v1080, %v1083
    %v1088 = vadd.f32 %v1076, %v1086
    %v1089 = vadd.f32 %v1077, %v1087
    %1090 = vset.pattern.permute.xlu0 47
    %1091 = vperm.xlu0 %1090, %v956
    %v1092 = vpop.permute.xlu0 %1091
    %v1094 = vrot.slane %v954, 3
    %v1095 = vrot.slane %v955, 3
    %v1098 = vmul.f32 %v1092, %v1094
    %v1099 = vmul.f32 %v1092, %v1095
    %v1100 = vadd.f32 %v1088, %v1098
    %v1101 = vadd.f32 %v1089, %v1099
    %1102 = vset.pattern.permute.xlu0 48
    %1103 = vperm.xlu0 %1102, %v956
    %v1104 = vpop.permute.xlu0 %1103
    %v1106 = vrot.slane %v954, 4
    %v1107 = vrot.slane %v955, 4
    %v1110 = vmul.f32 %v1104, %v1106
    %v1111 = vmul.f32 %v1104, %v1107
    %v1112 = vadd.f32 %v1100, %v1110
    %v1113 = vadd.f32 %v1101, %v1111
    %1114 = vset.pattern.permute.xlu0 49
    %1115 = vperm.xlu0 %1114, %v956
    %v1116 = vpop.permute.xlu0 %1115
    %v1118 = vrot.slane %v954, 5
    %v1119 = vrot.slane %v955, 5
    %v1122 = vmul.f32 %v1116, %v1118
    %v1123 = vmul.f32 %v1116, %v1119
    %v1124 = vadd.f32 %v1112, %v1122
    %v1125 = vadd.f32 %v1113, %v1123
    %1126 = vset.pattern.permute.xlu0 50
    %1127 = vperm.xlu0 %1126, %v956
    %v1128 = vpop.permute.xlu0 %1127
    %v1130 = vrot.slane %v954, 6
    %v1131 = vrot.slane %v955, 6
    %v1134 = vmul.f32 %v1128, %v1130
    %v1135 = vmul.f32 %v1128, %v1131
    %v1136 = vadd.f32 %v1124, %v1134
    %v1137 = vadd.f32 %v1125, %v1135
    %1138 = vset.pattern.permute.xlu0 51
    %1139 = vperm.xlu0 %1138, %v956
    %v1140 = vpop.permute.xlu0 %1139
    %v1142 = vrot.slane %v954, 7
    %v1143 = vrot.slane %v955, 7
    %v1146 = vmul.f32 %v1140, %v1142
    %v1147 = vmul.f32 %v1140, %v1143
    %v1148 = vadd.f32 %v1136, %v1146
    %v1149 = vadd.f32 %v1137, %v1147
    %v1150 = vand.u32 2147483647, %v1148
    %v1151 = vand.u32 2147483647, %v1149
    %v1152 = vsub.f32 0.0, %v1150
    %v1153 = vsub.f32 0.0, %v1151
    %v1154 = vmul.f32 %v1152, 1.442695
    %v1155 = vpow.pop %v1154
    %v1156 = vmul.f32 %v1153, 1.442695
    %v1157 = vpow.pop %v1156
    %vm1158 = vcmp.ge.f32.partialorder %v1148, 0.0
    %vm1159 = vcmp.ge.f32.partialorder %v1149, 0.0
    %v1160 = vadd.f32 %v1155, 1.0
    %v1161 = vadd.f32 %v1157, 1.0
    %v1162 = vrcp.pop %v1160
    %v1163 = vmul.f32 1.0, %v1162
    %v1164 = vrcp.pop %v1161
    %v1165 = vmul.f32 1.0, %v1164
    %v1166 = vmul.f32 %v1155, %v1162
    %v1167 = vmul.f32 %v1157, %v1164
    %v1168 = vsel %vm1158, %v1163, %v1166
    %v1169 = vsel %vm1159, %v1165, %v1167
    %v1172 = vcombine.low %v1168, %v1169
    %v1174 = vunpack.c.l.s4 1966171168
    %v1175 = vunpack.c.0.s8 %v1174
    %v1176 = vlaneseq
    %v1177 = vshrl.u32 %v1176, 7
    %v1178 = vsub.s32 %v1175, %v1177
    %v1179 = vrot.slane %v1172, %v1178
    %v1181 = vunpack.c.l.s4 1966171168
    %v1182 = vunpack.c.0.s8 %v1181
    %v1183 = vlaneseq
    %v1184 = vshrl.u32 %v1183, 7
    %v1185 = vsub.s32 %v1182, %v1184
    %v1186 = vrot.slane %v1179, %v1185
    %v1188 = vlaneseq
    %vm1189 = vcmp.ge.s32.totalorder %v1188, 0
    %vm1190 = vcmp.lt.s32.totalorder %v1188, 200
    %vm1191 = vmand %vm1189, %vm1190
    %1192 = vst.msk [vmem:[#allocation7] sm:$0x3] %vm1191, %v1186
    // Predicated region
    $region18: #{tpu_custom_call.1} parent=1 // pred_check
      _
    $region19: #{tpu_custom_call.1} parent=1 // pred_check_branch
      %1194 = sbr.rel (0) target = $region21
    $region20: #{tpu_custom_call.1} parent=1 // pred_region
      %s1196 = ssub.s32 32, 32
      %1197 = vsyncadd [#allocation4], %s1196
      %s1199 = sshll.u32 [#allocation7], 4
      %s1200 = int_to_ptr.vmem [resolvable:$true] %s1199
      %1202 = dma.vmem_to_hbm [thread:$0]  %s1200, 32, %s2, [#allocation4]
    $region21: #{tpu_custom_call.1} parent=1 // pred_fallthru
      _
    // Predicated region
    $region22: #{tpu_custom_call.1} parent=1 // pred_check
      _
    $region23: #{tpu_custom_call.1} parent=1 // pred_check_branch
      %1204 = sbr.rel (0) target = $region25
    $region24: #{tpu_custom_call.1} parent=1 // pred_region
      %1205 = dma.done [#allocation4], 32
    $region25: #{tpu_custom_call.1} parent=1 // pred_fallthru
      _
    %1206 = vsyncpa [#allocation3], 1
    %1207 = vsyncpa [#allocation6], 1
    %1208 = vsyncpa [#allocation4], 1

</llo_original>
